<compile_context>
chip_gen: v6e
topology: v6e:2x2x1
jax: 0.10.0
libtpu: 0.0.40
codegen_flags: <defaults>
</compile_context>

<pallas_src>
from functools import partial

import jax
import jax.numpy as jnp
from jax.experimental import pallas as pl
from jax.experimental.pallas import tpu as pltpu


# ------------------------- Stage 1: gridded backbone --------------------------


def backbone_kernel(x_ref, age_ref, w_ref, b_ref, aw_ref, feat_ref, acc_ref):
    """feat = relu(x @ [Wo|Wt] + [bo|bt] + age * [awo|awt]), K-tiled."""
    k = pl.program_id(2)

    @pl.when(k == 0)
    def _():
        acc_ref[...] = jnp.zeros_like(acc_ref)

    # Cast the f32 x tile to bf16 in-register (cheaper than a host-side cast
    # copy: x is read from HBM once, at 4 B/elem, with no write-back).
    acc_ref[...] += jnp.dot(x_ref[...].astype(jnp.bfloat16), w_ref[...],
                            preferred_element_type=jnp.float32)

    @pl.when(k == pl.num_programs(2) - 1)
    def _():
        y = acc_ref[...] + b_ref[...] + age_ref[...] * aw_ref[...]
        feat_ref[...] = jnp.maximum(y, 0.0).astype(feat_ref.dtype)


# --------------------- Stage 2: fused heads + BYOL loss -----------------------


def heads_loss_kernel(
    feat_ref,
    # online_proj: Linear(D,H) + BN(H) + ReLU + Linear(H,P)
    ow1_ref, ob1_ref, og1_ref, obe1_ref, ow2_ref, ob2_ref,
    # online_pred: Linear(P,H) + BN(H) + ReLU + Linear(H,P)
    pw1_ref, pb1_ref, pg1_ref, pbe1_ref, pw2_ref, pb2_ref,
    # target_proj: Linear(D,H) + BN(H) + ReLU + Linear(H,P)
    tw1_ref, tb1_ref, tg1_ref, tbe1_ref, tw2_ref, tb2_ref,
    loss_ref,
):
    eps_bn = 1e-5      # BatchNorm1d default eps
    eps_n = 1e-12      # F.normalize default eps
    n = feat_ref.shape[0]
    nh = n // 2
    d = ow1_ref.shape[0]   # base_dim

    def mm(a_bf16, w_ref, b_ref):
        # bf16 operands on the MXU, f32 accumulation, f32 bias add.
        return jnp.dot(a_bf16, w_ref[...],
                       preferred_element_type=jnp.float32) + b_ref[...]

    def bn_relu(xv, g_ref, b_ref):
        # BatchNorm1d training-mode (biased) batch stats, computed
        # independently per interleave-half (PyTorch runs each half through
        # the head separately).  Rows are ordered [half-a ; half-b], so a
        # [2, nh, H] reshape gives static per-half reductions (no masked
        # full-width selects); relayout-free when nh is a multiple of 8.
        x3 = xv.reshape(2, nh, xv.shape[-1])
        m = jnp.mean(x3, axis=1, keepdims=True)
        dlt = x3 - m
        v = jnp.mean(dlt * dlt, axis=1, keepdims=True)
        y = (dlt * jax.lax.rsqrt(v + eps_bn)).reshape(n, -1)
        y = y * g_ref[...] + b_ref[...]
        return jnp.maximum(y, 0.0)

    def l2norm(xv):
        # F.normalize: x / max(||x||, eps) == x * rsqrt(max(||x||^2, eps^2)).
        n2 = jnp.sum(xv * xv, axis=-1, keepdims=True)
        return xv * jax.lax.rsqrt(jnp.maximum(n2, eps_n * eps_n))

    feat = feat_ref[...]          # [N, 2D] bf16, rows ordered [half-a ; half-b]
    feat_on = feat[:, :d]         # online-backbone features (lane-aligned slice)
    feat_tg = feat[:, d:]         # target-backbone features

    # Online path: online_pred(online_proj(feat)) on both halves stacked (M=N).
    # Activations are carried in bf16 between layers; BN stats / l2norm / loss
    # stay in f32.
    h = bn_relu(mm(feat_on, ow1_ref, ob1_ref), og1_ref, obe1_ref).astype(jnp.bfloat16)
    z = mm(h, ow2_ref, ob2_ref).astype(jnp.bfloat16)
    h2 = bn_relu(mm(z, pw1_ref, pb1_ref), pg1_ref, pbe1_ref).astype(jnp.bfloat16)
    p = l2norm(mm(h2, pw2_ref, pb2_ref))                       # f32

    # Target path (no-grad branch in PyTorch; same math forward-only).
    th = bn_relu(mm(feat_tg, tw1_ref, tb1_ref), tg1_ref, tbe1_ref).astype(jnp.bfloat16)
    t = l2norm(mm(th, tw2_ref, tb2_ref))                       # f32

    # Swap halves of t (XLU sublane rotate by N/2): row i of t_sw is the
    # target partner of row i of p -> rows 0..nh-1 give <p_a, t_b>,
    # rows nh..N-1 give <p_b, t_a>.
    t_sw = pltpu.roll(t, shift=nh, axis=0)
    dots = jnp.sum(p * t_sw, axis=-1, keepdims=True)            # [N, 1]
    s = jnp.sum(dots, axis=0, keepdims=True)                    # [1, 1]
    # loss = (2 - 2*mean<p_a,t_b>) + (2 - 2*mean<p_b,t_a>) = 4 - (2/nh) * sum
    loss_ref[...] = 4.0 - (2.0 / nh) * s


# ------------------------------ JAX wrapper ----------------------------------

_VMEM_SPEC = pl.BlockSpec(memory_space=pltpu.MemorySpace.VMEM)


def _vmem_limit_bytes():
    # Per-generation scoped-VMEM budget: ~75% of physical VMEM, capped at
    # 100 MiB -> ~96 MiB on v5e/v6e (128 MiB), ~48 MiB on v7x (64 MiB).
    cap = 64 * 1024 * 1024
    try:
        cap = int(pltpu.get_tpu_info().vmem_capacity_bytes)
    except Exception:
        pass
    return min((cap * 3) // 4, 100 * 1024 * 1024)


def _pick_tile(dim, cap, align):
    """Largest multiple of `align` dividing `dim` that is <= cap (else dim)."""
    if dim <= cap:
        return dim
    t = (cap // align) * align
    while t > align and dim % t:
        t -= align
    if t <= 0 or dim % t:
        # TODO(synk): at real sizes pad the array to a tile multiple instead.
        return dim
    return t


@partial(jax.jit, static_argnames=("tm", "tn", "tk"))
def byol_forward(x, age, params, *, tm=256, tn=512, tk=2048):
    # Default tile caps target the v7x ~48 MiB working-set budget
    # (2 inputs x 2 buffers x tile + f32 acc); on v5e/v6e larger tk (4096+)
    # amortizes per-grid-step overhead further.  tn/tk are 128-aligned so the
    # same plan is valid on v5e's 128-wide MXU.
    N = x.shape[0]
    nh = N // 2
    xf = x.reshape(N, -1)                       # free reshape; x stays interleaved, f32
    age2 = age.reshape(N, 1).astype(jnp.float32)

    bc = params["backbone_cat"]                 # [F, 2D] bf16 master + f32 b / aw
    F = xf.shape[1]
    NO = bc["w"].shape[1]                       # 2 * base_dim (online | target cols)

    vmem = _vmem_limit_bytes()
    tm_ = _pick_tile(N, tm, 16)
    tn_ = _pick_tile(NO, tn, 128)
    tk_ = _pick_tile(F, tk, 128)

    # ---- Stage 1: gridded, double-buffered backbone matmul (both branches) ----
    feat = pl.pallas_call(
        backbone_kernel,
        out_shape=jax.ShapeDtypeStruct((N, NO), jnp.bfloat16),
        grid_spec=pltpu.PrefetchScalarGridSpec(
            num_scalar_prefetch=0,
            grid=(N // tm_, NO // tn_, F // tk_),
            in_specs=[
                pl.BlockSpec((tm_, tk_), lambda i, j, k: (i, k)),   # x   f32
                pl.BlockSpec((tm_, 1), lambda i, j, k: (i, 0)),     # age f32
                pl.BlockSpec((tk_, tn_), lambda i, j, k: (k, j)),   # W   bf16
                pl.BlockSpec((1, tn_), lambda i, j, k: (0, j)),     # b   f32
                pl.BlockSpec((1, tn_), lambda i, j, k: (0, j)),     # aw  f32
            ],
            out_specs=pl.BlockSpec((tm_, tn_), lambda i, j, k: (i, j)),
            scratch_shapes=[pltpu.VMEM((tm_, tn_), jnp.float32)],
        ),
        compiler_params=pltpu.CompilerParams(
            dimension_semantics=("parallel", "parallel", "arbitrary"),
            vmem_limit_bytes=vmem),
    )(xf, age2, bc["w"], bc["b"], bc["aw"])

    # De-interleave the SMALL feature matrix once (rows 0..nh-1 = x[::2],
    # rows nh.. = x[1::2]); x itself is never copied or transposed.
    feat_d = feat.reshape(nh, 2, NO).swapaxes(0, 1).reshape(N, NO)

    # ---- Stage 2: fused heads + loss (head weights VMEM-resident) ----
    op, pr, tp = (params["online_proj"], params["online_pred"],
                  params["target_proj"])

    def head_args(h):
        return (h["w1"], h["b1"], h["g1"], h["be1"], h["w2"], h["b2"])

    args = (feat_d, *head_args(op), *head_args(pr), *head_args(tp))

    loss = pl.pallas_call(
        heads_loss_kernel,
        out_shape=jax.ShapeDtypeStruct((1, 1), jnp.float32),
        in_specs=[_VMEM_SPEC] * len(args),
        out_specs=_VMEM_SPEC,
        compiler_params=pltpu.CompilerParams(vmem_limit_bytes=vmem),
    )(*args)
    return loss[0, 0]


# ------------------------------ Param init -----------------------------------


def _linear_init(key, fan_in, fan_out):
    k1, k2 = jax.random.split(key)
    bound = 1.0 / (fan_in ** 0.5)
    w = jax.random.uniform(k1, (fan_in, fan_out), jnp.float32, -bound, bound)
    b = jax.random.uniform(k2, (1, fan_out), jnp.float32, -bound, bound)
    return w, b


def _mlp_head_init(key, d_in, d_hidden, d_out):
    k1, k2 = jax.random.split(key)
    w1, b1 = _linear_init(k1, d_in, d_hidden)
    w2, b2 = _linear_init(k2, d_hidden, d_out)
    # bf16 weight masters stored once (no per-step f32->bf16 HBM cast copy).
    return {
        "w1": w1.astype(jnp.bfloat16), "b1": b1,
        "g1": jnp.ones((1, d_hidden), jnp.float32),    # BN gamma
        "be1": jnp.zeros((1, d_hidden), jnp.float32),  # BN beta
        "w2": w2.astype(jnp.bfloat16), "b2": b2,
    }


def _backbone_init(key, feat_in, base_dim):
    k1, k2 = jax.random.split(key)
    w, b = _linear_init(k1, feat_in, base_dim)
    aw = jax.random.uniform(k2, (1, base_dim), jnp.float32, -0.1, 0.1)
    return w, b, aw


def init_params(key, feat_in, base_dim, mlp_hidden, proj_size):
    kbo, kbt, kp, kq, kt = jax.random.split(key, 5)
    # Online / target backbones fused column-wise: feat = x @ [Wo|Wt] needs one
    # MXU pass over x for both branches.  (PyTorch deepcopies the online nets
    # at init; distinct values are used here so both weight column-halves are
    # actually exercised -- after EMA updates they diverge anyway.)
    wo, bo, ao = _backbone_init(kbo, feat_in, base_dim)
    wt, bt, at = _backbone_init(kbt, feat_in, base_dim)
    backbone_cat = {
        "w": jnp.concatenate([wo, wt], axis=1).astype(jnp.bfloat16),  # [F, 2D]
        "b": jnp.concatenate([bo, bt], axis=1),                       # [1, 2D]
        "aw": jnp.concatenate([ao, at], axis=1),                      # [1, 2D]
    }
    return {
        "backbone_cat": backbone_cat,
        "online_proj": _mlp_head_init(kp, base_dim, mlp_hidden, proj_size),
        "online_pred": _mlp_head_init(kq, proj_size, mlp_hidden, proj_size),
        "target_proj": _mlp_head_init(kt, base_dim, mlp_hidden, proj_size),
    }


# --------------------------- Pure-JAX reference -------------------------------


def _ref_forward(x, age, params):
    """Mirrors the PyTorch forward structure (strided split, per-half head
    calls), with the same bf16 matmul operands as the kernels."""
    bc = params["backbone_cat"]
    D = params["online_proj"]["w1"].shape[0]
    xf = x.reshape(x.shape[0], -1)

    def mm(a, w, b):
        return jnp.dot(a.astype(jnp.bfloat16), w,
                       preferred_element_type=jnp.float32) + b

    def backbone(xh, ah, sl):
        y = mm(xh, bc["w"][:, sl], bc["b"][:, sl]) + ah[:, None] * bc["aw"][:, sl]
        return jnp.maximum(y, 0.0)

    def head(xh, hp):
        y = mm(xh.astype(jnp.bfloat16), hp["w1"], hp["b1"])
        m = jnp.mean(y, axis=0, keepdims=True)
        v = jnp.mean((y - m) * (y - m), axis=0, keepdims=True)
        y = (y - m) * jax.lax.rsqrt(v + 1e-5) * hp["g1"] + hp["be1"]
        return mm(jnp.maximum(y, 0.0), hp["w2"], hp["b2"])

    def l2n(v):
        nrm = jnp.sqrt(jnp.sum(v * v, axis=-1, keepdims=True))
        return v / jnp.maximum(nrm, 1e-12)

    on_sl, tg_sl = slice(0, D), slice(D, 2 * D)
    x_a, age_a = xf[0::2], age[0::2]
    x_b, age_b = xf[1::2], age[1::2]

    def branch(xo, ao, xt, at):
        p = l2n(head(head(backbone(xo, ao, on_sl), params["online_proj"]),
                     params["online_pred"]))
        t = l2n(head(backbone(xt, at, tg_sl), params["target_proj"]))
        return 2.0 - 2.0 * jnp.mean(jnp.sum(p * t, axis=-1))

    return branch(x_a, age_a, x_b, age_b) + branch(x_b, age_b, x_a, age_a)


# --------------------------------- main ---------------------------------------

if __name__ == "__main__":
    # Small, lane-dense toy shapes consistent with the module (real defaults
    # mlp_hidden=4096 / projection=256 are also multiples of 128).  Batch is a
    # multiple of 16 so the per-half BN reductions stay relayout-free.
    N, C, H, W = 32, 4, 16, 16
    base_dim = 128
    mlp_hidden_size = 256
    projection_size = 128

    key = jax.random.PRNGKey(0)
    kx, ka, kp = jax.random.split(key, 3)
    x = jax.random.normal(kx, (N, C, H, W), jnp.float32)   # NCHW like PyTorch
    age = jax.random.uniform(ka, (N,), jnp.float32, 0.0, 1.0)

    params = init_params(kp, C * H * W, base_dim, mlp_hidden_size,
                         projection_size)

    # Small tile caps so the toy problem exercises a real (M, N, K) grid
    # (grid = (2, 2, 4) here); the kwarg defaults target production sizes.
    loss = jax.block_until_ready(
        byol_forward(x, age, params, tm=16, tn=128, tk=256))
    ref = jax.block_until_ready(_ref_forward(x, age, params))

    assert loss.shape == () and bool(jnp.isfinite(loss)), loss
    assert abs(float(loss) - float(ref)) < 5e-2, (float(loss), float(ref))
    print("KERNEL_OK")
</pallas_src>

<mosaic_0001>
module attributes {stable_mosaic.version = 11 : i64} {
  func.func @backbone_kernel(%arg0: i32, %arg1: i32, %arg2: i32, %arg3: memref<16x256xf32, #tpu.memory_space<vmem>>, %arg4: memref<16x1xf32, #tpu.memory_space<vmem>>, %arg5: memref<256x128xbf16, #tpu.memory_space<vmem>>, %arg6: memref<1x128xf32, #tpu.memory_space<vmem>>, %arg7: memref<1x128xf32, #tpu.memory_space<vmem>>, %arg8: memref<16x128xbf16, #tpu.memory_space<vmem>>, %arg9: memref<16x128xf32, #tpu.memory_space<vmem>>) attributes {dimension_semantics = [#tpu.dimension_semantics<parallel>, #tpu.dimension_semantics<parallel>, #tpu.dimension_semantics<arbitrary>], iteration_bounds = array<i64: 2, 2, 4>, scalar_prefetch = 0 : i64, scratch_operands = 1 : i64, tpu.core_type = #tpu.core_type<tc>, window_params = [{transform_indices = @transform_0, window_bounds = array<i64: 16, 256>}, {transform_indices = @transform_1, window_bounds = array<i64: 16, 1>}, {transform_indices = @transform_2, window_bounds = array<i64: 256, 128>}, {transform_indices = @transform_3, window_bounds = array<i64: 1, 128>}, {transform_indices = @transform_4, window_bounds = array<i64: 1, 128>}, {transform_indices = @transform_5, window_bounds = array<i64: 16, 128>}]} {
    %c0_i32 = arith.constant 0 : i32
    %0 = arith.cmpi eq, %arg2, %c0_i32 : i32
    %1 = arith.extui %0 : i1 to i32
    %c0_i32_0 = arith.constant 0 : i32
    %2 = arith.cmpi ne, %1, %c0_i32_0 : i32
    scf.if %2 {
      %cst_9 = arith.constant 0.000000e+00 : f32
      %13 = vector.broadcast %cst_9 : f32 to vector<16x128xf32>
      %c0_10 = arith.constant 0 : index
      %c0_11 = arith.constant 0 : index
      %14 = vector.load %arg9[%c0_10, %c0_11] : memref<16x128xf32, #tpu.memory_space<vmem>>, vector<16x128xf32>
      tpu.vector_store %arg9[%c0_10, %c0_11], %13 {strides = array<i32>} : memref<16x128xf32, #tpu.memory_space<vmem>>, vector<16x128xf32>,
    } else {
    }
    %c0 = arith.constant 0 : index
    %c0_1 = arith.constant 0 : index
    %3 = vector.load %arg9[%c0, %c0_1] : memref<16x128xf32, #tpu.memory_space<vmem>>, vector<16x128xf32>
    %c0_2 = arith.constant 0 : index
    %c0_3 = arith.constant 0 : index
    %4 = vector.load %arg3[%c0_2, %c0_3] : memref<16x256xf32, #tpu.memory_space<vmem>>, vector<16x256xf32>
    %5 = arith.truncf %4 : vector<16x256xf32> to vector<16x256xbf16>
    %c0_4 = arith.constant 0 : index
    %c0_5 = arith.constant 0 : index
    %6 = vector.load %arg5[%c0_4, %c0_5] : memref<256x128xbf16, #tpu.memory_space<vmem>>, vector<256x128xbf16>
    %cst = arith.constant dense<0.000000e+00> : vector<16x128xf32>
    %7 = tpu.matmul %5, %6, %cst {dimension_numbers = #tpu.dot_dimension_numbers<[1], [0], [0], [1], [0, 0, 1, 1], [], []>} : vector<16x256xbf16>, vector<256x128xbf16>, vector<16x128xf32> -> vector<16x128xf32>
    %8 = arith.addf %3, %7 : vector<16x128xf32>
    %c0_6 = arith.constant 0 : index
    %c0_7 = arith.constant 0 : index
    %9 = vector.load %arg9[%c0_6, %c0_7] : memref<16x128xf32, #tpu.memory_space<vmem>>, vector<16x128xf32>
    tpu.vector_store %arg9[%c0_6, %c0_7], %8 {strides = array<i32>} : memref<16x128xf32, #tpu.memory_space<vmem>>, vector<16x128xf32>,
    %c3_i32 = arith.constant 3 : i32
    %10 = arith.cmpi eq, %arg2, %c3_i32 : i32
    %11 = arith.extui %10 : i1 to i32
    %c0_i32_8 = arith.constant 0 : i32
    %12 = arith.cmpi ne, %11, %c0_i32_8 : i32
    scf.if %12 {
      %c0_9 = arith.constant 0 : index
      %c0_10 = arith.constant 0 : index
      %13 = vector.load %arg9[%c0_9, %c0_10] : memref<16x128xf32, #tpu.memory_space<vmem>>, vector<16x128xf32>
      %c0_11 = arith.constant 0 : index
      %c0_12 = arith.constant 0 : index
      %14 = vector.load %arg6[%c0_11, %c0_12] : memref<1x128xf32, #tpu.memory_space<vmem>>, vector<1x128xf32>
      %15 = vector.broadcast %14 : vector<1x128xf32> to vector<16x128xf32>
      %16 = arith.addf %13, %15 : vector<16x128xf32>
      %c0_13 = arith.constant 0 : index
      %c0_14 = arith.constant 0 : index
      %17 = vector.load %arg4[%c0_13, %c0_14] : memref<16x1xf32, #tpu.memory_space<vmem>>, vector<16x1xf32>
      %c0_15 = arith.constant 0 : index
      %c0_16 = arith.constant 0 : index
      %18 = vector.load %arg7[%c0_15, %c0_16] : memref<1x128xf32, #tpu.memory_space<vmem>>, vector<1x128xf32>
      %19 = vector.broadcast %17 : vector<16x1xf32> to vector<16x128xf32>
      %20 = vector.broadcast %18 : vector<1x128xf32> to vector<16x128xf32>
      %21 = arith.mulf %19, %20 : vector<16x128xf32>
      %22 = arith.addf %16, %21 : vector<16x128xf32>
      %cst_17 = arith.constant 0.000000e+00 : f32
      %23 = vector.broadcast %cst_17 : f32 to vector<16x128xf32>
      %24 = arith.maximumf %22, %23 : vector<16x128xf32>
      %25 = arith.truncf %24 : vector<16x128xf32> to vector<16x128xbf16>
      %c0_18 = arith.constant 0 : index
      %c0_19 = arith.constant 0 : index
      %26 = vector.load %arg8[%c0_18, %c0_19] : memref<16x128xbf16, #tpu.memory_space<vmem>>, vector<16x128xbf16>
      tpu.vector_store %arg8[%c0_18, %c0_19], %25 {strides = array<i32>} : memref<16x128xbf16, #tpu.memory_space<vmem>>, vector<16x128xbf16>,
    } else {
    }
    return
  }
  func.func @transform_0(%arg0: i32, %arg1: i32, %arg2: i32) -> (i32, i32) {
    %c0_i32 = arith.constant 0 : i32
    return %arg0, %arg2 : i32, i32
  }
  func.func @transform_1(%arg0: i32, %arg1: i32, %arg2: i32) -> (i32, i32) {
    %c0_i32 = arith.constant 0 : i32
    %c0_i32_0 = arith.constant 0 : i32
    return %arg0, %c0_i32 : i32, i32
  }
  func.func @transform_2(%arg0: i32, %arg1: i32, %arg2: i32) -> (i32, i32) {
    %c0_i32 = arith.constant 0 : i32
    return %arg2, %arg1 : i32, i32
  }
  func.func @transform_3(%arg0: i32, %arg1: i32, %arg2: i32) -> (i32, i32) {
    %c0_i32 = arith.constant 0 : i32
    %c0_i32_0 = arith.constant 0 : i32
    return %c0_i32, %arg1 : i32, i32
  }
  func.func @transform_4(%arg0: i32, %arg1: i32, %arg2: i32) -> (i32, i32) {
    %c0_i32 = arith.constant 0 : i32
    %c0_i32_0 = arith.constant 0 : i32
    return %c0_i32, %arg1 : i32, i32
  }
  func.func @transform_5(%arg0: i32, %arg1: i32, %arg2: i32) -> (i32, i32) {
    %c0_i32 = arith.constant 0 : i32
    return %arg0, %arg1 : i32, i32
  }
}

module attributes {stable_mosaic.version = 11 : i64} {
  func.func @heads_loss_kernel(%arg0: memref<32x256xbf16, #tpu.memory_space<vmem>>, %arg1: memref<128x256xbf16, #tpu.memory_space<vmem>>, %arg2: memref<1x256xf32, #tpu.memory_space<vmem>>, %arg3: memref<1x256xf32, #tpu.memory_space<vmem>>, %arg4: memref<1x256xf32, #tpu.memory_space<vmem>>, %arg5: memref<256x128xbf16, #tpu.memory_space<vmem>>, %arg6: memref<1x128xf32, #tpu.memory_space<vmem>>, %arg7: memref<128x256xbf16, #tpu.memory_space<vmem>>, %arg8: memref<1x256xf32, #tpu.memory_space<vmem>>, %arg9: memref<1x256xf32, #tpu.memory_space<vmem>>, %arg10: memref<1x256xf32, #tpu.memory_space<vmem>>, %arg11: memref<256x128xbf16, #tpu.memory_space<vmem>>, %arg12: memref<1x128xf32, #tpu.memory_space<vmem>>, %arg13: memref<128x256xbf16, #tpu.memory_space<vmem>>, %arg14: memref<1x256xf32, #tpu.memory_space<vmem>>, %arg15: memref<1x256xf32, #tpu.memory_space<vmem>>, %arg16: memref<1x256xf32, #tpu.memory_space<vmem>>, %arg17: memref<256x128xbf16, #tpu.memory_space<vmem>>, %arg18: memref<1x128xf32, #tpu.memory_space<vmem>>, %arg19: memref<1x1xf32, #tpu.memory_space<vmem>>) attributes {dimension_semantics = [], scalar_prefetch = 0 : i64, scratch_operands = 0 : i64, tpu.core_type = #tpu.core_type<tc>} {
    %c0 = arith.constant 0 : index
    %c0_0 = arith.constant 0 : index
    %0 = vector.load %arg0[%c0, %c0_0] : memref<32x256xbf16, #tpu.memory_space<vmem>>, vector<32x256xbf16>
    %1 = vector.extract_strided_slice %0 {offsets = [0, 0], sizes = [32, 128], strides = [1, 1]} : vector<32x256xbf16> to vector<32x128xbf16>
    %2 = vector.extract_strided_slice %0 {offsets = [0, 128], sizes = [32, 128], strides = [1, 1]} : vector<32x256xbf16> to vector<32x128xbf16>
    %c0_1 = arith.constant 0 : index
    %c0_2 = arith.constant 0 : index
    %3 = vector.load %arg1[%c0_1, %c0_2] : memref<128x256xbf16, #tpu.memory_space<vmem>>, vector<128x256xbf16>
    %cst = arith.constant dense<0.000000e+00> : vector<32x256xf32>
    %4 = tpu.matmul %1, %3, %cst {dimension_numbers = #tpu.dot_dimension_numbers<[1], [0], [0], [1], [0, 0, 1, 1], [], []>} : vector<32x128xbf16>, vector<128x256xbf16>, vector<32x256xf32> -> vector<32x256xf32>
    %c0_3 = arith.constant 0 : index
    %c0_4 = arith.constant 0 : index
    %5 = vector.load %arg2[%c0_3, %c0_4] : memref<1x256xf32, #tpu.memory_space<vmem>>, vector<1x256xf32>
    %6 = vector.broadcast %5 : vector<1x256xf32> to vector<32x256xf32>
    %7 = arith.addf %4, %6 : vector<32x256xf32>
    %8 = vector.shape_cast %7 : vector<32x256xf32> to vector<2x16x256xf32>
    %cst_5 = arith.constant dense<0.000000e+00> : vector<2x256xf32>
    %9 = vector.multi_reduction <add>, %8, %cst_5 [1] : vector<2x16x256xf32> to vector<2x256xf32>
    %10 = vector.shape_cast %9 : vector<2x256xf32> to vector<2x1x256xf32>
    %cst_6 = arith.constant 1.600000e+01 : f32
    %11 = vector.broadcast %cst_6 : f32 to vector<2x1x256xf32>
    %12 = arith.divf %10, %11 : vector<2x1x256xf32>
    %13 = vector.broadcast %12 : vector<2x1x256xf32> to vector<2x16x256xf32>
    %14 = arith.subf %8, %13 : vector<2x16x256xf32>
    %15 = arith.mulf %14, %14 : vector<2x16x256xf32>
    %cst_7 = arith.constant dense<0.000000e+00> : vector<2x256xf32>
    %16 = vector.multi_reduction <add>, %15, %cst_7 [1] : vector<2x16x256xf32> to vector<2x256xf32>
    %17 = vector.shape_cast %16 : vector<2x256xf32> to vector<2x1x256xf32>
    %cst_8 = arith.constant 1.600000e+01 : f32
    %18 = vector.broadcast %cst_8 : f32 to vector<2x1x256xf32>
    %19 = arith.divf %17, %18 : vector<2x1x256xf32>
    %cst_9 = arith.constant 9.99999974E-6 : f32
    %20 = vector.broadcast %cst_9 : f32 to vector<2x1x256xf32>
    %21 = arith.addf %19, %20 : vector<2x1x256xf32>
    %22 = math.rsqrt %21 : vector<2x1x256xf32>
    %23 = vector.broadcast %22 : vector<2x1x256xf32> to vector<2x16x256xf32>
    %24 = arith.mulf %14, %23 : vector<2x16x256xf32>
    %25 = vector.shape_cast %24 : vector<2x16x256xf32> to vector<32x256xf32>
    %c0_10 = arith.constant 0 : index
    %c0_11 = arith.constant 0 : index
    %26 = vector.load %arg3[%c0_10, %c0_11] : memref<1x256xf32, #tpu.memory_space<vmem>>, vector<1x256xf32>
    %27 = vector.broadcast %26 : vector<1x256xf32> to vector<32x256xf32>
    %28 = arith.mulf %25, %27 : vector<32x256xf32>
    %c0_12 = arith.constant 0 : index
    %c0_13 = arith.constant 0 : index
    %29 = vector.load %arg4[%c0_12, %c0_13] : memref<1x256xf32, #tpu.memory_space<vmem>>, vector<1x256xf32>
    %30 = vector.broadcast %29 : vector<1x256xf32> to vector<32x256xf32>
    %31 = arith.addf %28, %30 : vector<32x256xf32>
    %cst_14 = arith.constant 0.000000e+00 : f32
    %32 = vector.broadcast %cst_14 : f32 to vector<32x256xf32>
    %33 = arith.maximumf %31, %32 : vector<32x256xf32>
    %34 = arith.truncf %33 : vector<32x256xf32> to vector<32x256xbf16>
    %c0_15 = arith.constant 0 : index
    %c0_16 = arith.constant 0 : index
    %35 = vector.load %arg5[%c0_15, %c0_16] : memref<256x128xbf16, #tpu.memory_space<vmem>>, vector<256x128xbf16>
    %cst_17 = arith.constant dense<0.000000e+00> : vector<32x128xf32>
    %36 = tpu.matmul %34, %35, %cst_17 {dimension_numbers = #tpu.dot_dimension_numbers<[1], [0], [0], [1], [0, 0, 1, 1], [], []>} : vector<32x256xbf16>, vector<256x128xbf16>, vector<32x128xf32> -> vector<32x128xf32>
    %c0_18 = arith.constant 0 : index
    %c0_19 = arith.constant 0 : index
    %37 = vector.load %arg6[%c0_18, %c0_19] : memref<1x128xf32, #tpu.memory_space<vmem>>, vector<1x128xf32>
    %38 = vector.broadcast %37 : vector<1x128xf32> to vector<32x128xf32>
    %39 = arith.addf %36, %38 : vector<32x128xf32>
    %40 = arith.truncf %39 : vector<32x128xf32> to vector<32x128xbf16>
    %c0_20 = arith.constant 0 : index
    %c0_21 = arith.constant 0 : index
    %41 = vector.load %arg7[%c0_20, %c0_21] : memref<128x256xbf16, #tpu.memory_space<vmem>>, vector<128x256xbf16>
    %cst_22 = arith.constant dense<0.000000e+00> : vector<32x256xf32>
    %42 = tpu.matmul %40, %41, %cst_22 {dimension_numbers = #tpu.dot_dimension_numbers<[1], [0], [0], [1], [0, 0, 1, 1], [], []>} : vector<32x128xbf16>, vector<128x256xbf16>, vector<32x256xf32> -> vector<32x256xf32>
    %c0_23 = arith.constant 0 : index
    %c0_24 = arith.constant 0 : index
    %43 = vector.load %arg8[%c0_23, %c0_24] : memref<1x256xf32, #tpu.memory_space<vmem>>, vector<1x256xf32>
    %44 = vector.broadcast %43 : vector<1x256xf32> to vector<32x256xf32>
    %45 = arith.addf %42, %44 : vector<32x256xf32>
    %46 = vector.shape_cast %45 : vector<32x256xf32> to vector<2x16x256xf32>
    %cst_25 = arith.constant dense<0.000000e+00> : vector<2x256xf32>
    %47 = vector.multi_reduction <add>, %46, %cst_25 [1] : vector<2x16x256xf32> to vector<2x256xf32>
    %48 = vector.shape_cast %47 : vector<2x256xf32> to vector<2x1x256xf32>
    %cst_26 = arith.constant 1.600000e+01 : f32
    %49 = vector.broadcast %cst_26 : f32 to vector<2x1x256xf32>
    %50 = arith.divf %48, %49 : vector<2x1x256xf32>
    %51 = vector.broadcast %50 : vector<2x1x256xf32> to vector<2x16x256xf32>
    %52 = arith.subf %46, %51 : vector<2x16x256xf32>
    %53 = arith.mulf %52, %52 : vector<2x16x256xf32>
    %cst_27 = arith.constant dense<0.000000e+00> : vector<2x256xf32>
    %54 = vector.multi_reduction <add>, %53, %cst_27 [1] : vector<2x16x256xf32> to vector<2x256xf32>
    %55 = vector.shape_cast %54 : vector<2x256xf32> to vector<2x1x256xf32>
    %cst_28 = arith.constant 1.600000e+01 : f32
    %56 = vector.broadcast %cst_28 : f32 to vector<2x1x256xf32>
    %57 = arith.divf %55, %56 : vector<2x1x256xf32>
    %cst_29 = arith.constant 9.99999974E-6 : f32
    %58 = vector.broadcast %cst_29 : f32 to vector<2x1x256xf32>
    %59 = arith.addf %57, %58 : vector<2x1x256xf32>
    %60 = math.rsqrt %59 : vector<2x1x256xf32>
    %61 = vector.broadcast %60 : vector<2x1x256xf32> to vector<2x16x256xf32>
    %62 = arith.mulf %52, %61 : vector<2x16x256xf32>
    %63 = vector.shape_cast %62 : vector<2x16x256xf32> to vector<32x256xf32>
    %c0_30 = arith.constant 0 : index
    %c0_31 = arith.constant 0 : index
    %64 = vector.load %arg9[%c0_30, %c0_31] : memref<1x256xf32, #tpu.memory_space<vmem>>, vector<1x256xf32>
    %65 = vector.broadcast %64 : vector<1x256xf32> to vector<32x256xf32>
    %66 = arith.mulf %63, %65 : vector<32x256xf32>
    %c0_32 = arith.constant 0 : index
    %c0_33 = arith.constant 0 : index
    %67 = vector.load %arg10[%c0_32, %c0_33] : memref<1x256xf32, #tpu.memory_space<vmem>>, vector<1x256xf32>
    %68 = vector.broadcast %67 : vector<1x256xf32> to vector<32x256xf32>
    %69 = arith.addf %66, %68 : vector<32x256xf32>
    %cst_34 = arith.constant 0.000000e+00 : f32
    %70 = vector.broadcast %cst_34 : f32 to vector<32x256xf32>
    %71 = arith.maximumf %69, %70 : vector<32x256xf32>
    %72 = arith.truncf %71 : vector<32x256xf32> to vector<32x256xbf16>
    %c0_35 = arith.constant 0 : index
    %c0_36 = arith.constant 0 : index
    %73 = vector.load %arg11[%c0_35, %c0_36] : memref<256x128xbf16, #tpu.memory_space<vmem>>, vector<256x128xbf16>
    %cst_37 = arith.constant dense<0.000000e+00> : vector<32x128xf32>
    %74 = tpu.matmul %72, %73, %cst_37 {dimension_numbers = #tpu.dot_dimension_numbers<[1], [0], [0], [1], [0, 0, 1, 1], [], []>} : vector<32x256xbf16>, vector<256x128xbf16>, vector<32x128xf32> -> vector<32x128xf32>
    %c0_38 = arith.constant 0 : index
    %c0_39 = arith.constant 0 : index
    %75 = vector.load %arg12[%c0_38, %c0_39] : memref<1x128xf32, #tpu.memory_space<vmem>>, vector<1x128xf32>
    %76 = vector.broadcast %75 : vector<1x128xf32> to vector<32x128xf32>
    %77 = arith.addf %74, %76 : vector<32x128xf32>
    %78 = arith.mulf %77, %77 : vector<32x128xf32>
    %cst_40 = arith.constant dense<0.000000e+00> : vector<32xf32>
    %79 = vector.multi_reduction <add>, %78, %cst_40 [1] : vector<32x128xf32> to vector<32xf32>
    %80 = vector.shape_cast %79 : vector<32xf32> to vector<32x1xf32>
    %cst_41 = arith.constant 1.000000e-24 : f32
    %81 = vector.broadcast %cst_41 : f32 to vector<32x1xf32>
    %82 = arith.maximumf %80, %81 : vector<32x1xf32>
    %83 = math.rsqrt %82 : vector<32x1xf32>
    %84 = vector.broadcast %83 : vector<32x1xf32> to vector<32x128xf32>
    %85 = arith.mulf %77, %84 : vector<32x128xf32>
    %c0_42 = arith.constant 0 : index
    %c0_43 = arith.constant 0 : index
    %86 = vector.load %arg13[%c0_42, %c0_43] : memref<128x256xbf16, #tpu.memory_space<vmem>>, vector<128x256xbf16>
    %cst_44 = arith.constant dense<0.000000e+00> : vector<32x256xf32>
    %87 = tpu.matmul %2, %86, %cst_44 {dimension_numbers = #tpu.dot_dimension_numbers<[1], [0], [0], [1], [0, 0, 1, 1], [], []>} : vector<32x128xbf16>, vector<128x256xbf16>, vector<32x256xf32> -> vector<32x256xf32>
    %c0_45 = arith.constant 0 : index
    %c0_46 = arith.constant 0 : index
    %88 = vector.load %arg14[%c0_45, %c0_46] : memref<1x256xf32, #tpu.memory_space<vmem>>, vector<1x256xf32>
    %89 = vector.broadcast %88 : vector<1x256xf32> to vector<32x256xf32>
    %90 = arith.addf %87, %89 : vector<32x256xf32>
    %91 = vector.shape_cast %90 : vector<32x256xf32> to vector<2x16x256xf32>
    %cst_47 = arith.constant dense<0.000000e+00> : vector<2x256xf32>
    %92 = vector.multi_reduction <add>, %91, %cst_47 [1] : vector<2x16x256xf32> to vector<2x256xf32>
    %93 = vector.shape_cast %92 : vector<2x256xf32> to vector<2x1x256xf32>
    %cst_48 = arith.constant 1.600000e+01 : f32
    %94 = vector.broadcast %cst_48 : f32 to vector<2x1x256xf32>
    %95 = arith.divf %93, %94 : vector<2x1x256xf32>
    %96 = vector.broadcast %95 : vector<2x1x256xf32> to vector<2x16x256xf32>
    %97 = arith.subf %91, %96 : vector<2x16x256xf32>
    %98 = arith.mulf %97, %97 : vector<2x16x256xf32>
    %cst_49 = arith.constant dense<0.000000e+00> : vector<2x256xf32>
    %99 = vector.multi_reduction <add>, %98, %cst_49 [1] : vector<2x16x256xf32> to vector<2x256xf32>
    %100 = vector.shape_cast %99 : vector<2x256xf32> to vector<2x1x256xf32>
    %cst_50 = arith.constant 1.600000e+01 : f32
    %101 = vector.broadcast %cst_50 : f32 to vector<2x1x256xf32>
    %102 = arith.divf %100, %101 : vector<2x1x256xf32>
    %cst_51 = arith.constant 9.99999974E-6 : f32
    %103 = vector.broadcast %cst_51 : f32 to vector<2x1x256xf32>
    %104 = arith.addf %102, %103 : vector<2x1x256xf32>
    %105 = math.rsqrt %104 : vector<2x1x256xf32>
    %106 = vector.broadcast %105 : vector<2x1x256xf32> to vector<2x16x256xf32>
    %107 = arith.mulf %97, %106 : vector<2x16x256xf32>
    %108 = vector.shape_cast %107 : vector<2x16x256xf32> to vector<32x256xf32>
    %c0_52 = arith.constant 0 : index
    %c0_53 = arith.constant 0 : index
    %109 = vector.load %arg15[%c0_52, %c0_53] : memref<1x256xf32, #tpu.memory_space<vmem>>, vector<1x256xf32>
    %110 = vector.broadcast %109 : vector<1x256xf32> to vector<32x256xf32>
    %111 = arith.mulf %108, %110 : vector<32x256xf32>
    %c0_54 = arith.constant 0 : index
    %c0_55 = arith.constant 0 : index
    %112 = vector.load %arg16[%c0_54, %c0_55] : memref<1x256xf32, #tpu.memory_space<vmem>>, vector<1x256xf32>
    %113 = vector.broadcast %112 : vector<1x256xf32> to vector<32x256xf32>
    %114 = arith.addf %111, %113 : vector<32x256xf32>
    %cst_56 = arith.constant 0.000000e+00 : f32
    %115 = vector.broadcast %cst_56 : f32 to vector<32x256xf32>
    %116 = arith.maximumf %114, %115 : vector<32x256xf32>
    %117 = arith.truncf %116 : vector<32x256xf32> to vector<32x256xbf16>
    %c0_57 = arith.constant 0 : index
    %c0_58 = arith.constant 0 : index
    %118 = vector.load %arg17[%c0_57, %c0_58] : memref<256x128xbf16, #tpu.memory_space<vmem>>, vector<256x128xbf16>
    %cst_59 = arith.constant dense<0.000000e+00> : vector<32x128xf32>
    %119 = tpu.matmul %117, %118, %cst_59 {dimension_numbers = #tpu.dot_dimension_numbers<[1], [0], [0], [1], [0, 0, 1, 1], [], []>} : vector<32x256xbf16>, vector<256x128xbf16>, vector<32x128xf32> -> vector<32x128xf32>
    %c0_60 = arith.constant 0 : index
    %c0_61 = arith.constant 0 : index
    %120 = vector.load %arg18[%c0_60, %c0_61] : memref<1x128xf32, #tpu.memory_space<vmem>>, vector<1x128xf32>
    %121 = vector.broadcast %120 : vector<1x128xf32> to vector<32x128xf32>
    %122 = arith.addf %119, %121 : vector<32x128xf32>
    %123 = arith.mulf %122, %122 : vector<32x128xf32>
    %cst_62 = arith.constant dense<0.000000e+00> : vector<32xf32>
    %124 = vector.multi_reduction <add>, %123, %cst_62 [1] : vector<32x128xf32> to vector<32xf32>
    %125 = vector.shape_cast %124 : vector<32xf32> to vector<32x1xf32>
    %cst_63 = arith.constant 1.000000e-24 : f32
    %126 = vector.broadcast %cst_63 : f32 to vector<32x1xf32>
    %127 = arith.maximumf %125, %126 : vector<32x1xf32>
    %128 = math.rsqrt %127 : vector<32x1xf32>
    %129 = vector.broadcast %128 : vector<32x1xf32> to vector<32x128xf32>
    %130 = arith.mulf %122, %129 : vector<32x128xf32>
    %c16_i32 = arith.constant 16 : i32
    %131 = tpu.dynamic_rotate %130 by %c16_i32 dim 0 : vector<32x128xf32>, i32 -> vector<32x128xf32>
    %132 = arith.mulf %85, %131 : vector<32x128xf32>
    %cst_64 = arith.constant dense<0.000000e+00> : vector<32xf32>
    %133 = vector.multi_reduction <add>, %132, %cst_64 [1] : vector<32x128xf32> to vector<32xf32>
    %134 = vector.shape_cast %133 : vector<32xf32> to vector<32x1xf32>
    %cst_65 = arith.constant dense<0.000000e+00> : vector<1xf32>
    %135 = vector.multi_reduction <add>, %134, %cst_65 [0] : vector<32x1xf32> to vector<1xf32>
    %136 = vector.shape_cast %135 : vector<1xf32> to vector<1x1xf32>
    %cst_66 = arith.constant 1.250000e-01 : f32
    %137 = vector.broadcast %cst_66 : f32 to vector<1x1xf32>
    %138 = arith.mulf %137, %136 : vector<1x1xf32>
    %cst_67 = arith.constant 4.000000e+00 : f32
    %139 = vector.broadcast %cst_67 : f32 to vector<1x1xf32>
    %140 = arith.subf %139, %138 : vector<1x1xf32>
    %c0_68 = arith.constant 0 : index
    %c0_69 = arith.constant 0 : index
    %141 = vector.load %arg19[%c0_68, %c0_69] : memref<1x1xf32, #tpu.memory_space<vmem>>, vector<1x1xf32>
    tpu.vector_store %arg19[%c0_68, %c0_69], %140 {strides = array<i32>} : memref<1x1xf32, #tpu.memory_space<vmem>>, vector<1x1xf32>,
    return
  }
}

</mosaic_0001>

<llo_original>
// kernel: byol_forward.2
$region0: #{byol_forward.2}
  #allocation0 [shape = 'u32[]', space=smem, size = 0x4, offset = 0x4, fixed_abs, tag = 'smem constant byte address 0x4 - core index']
  #allocation1 [shape = 'u32[144,128]{1,0:T(1,128)}', space=vmem, size = 0x12000, scoped, tag = 'internal scratch']
  #allocation2 [shape = 'f32[16,128]{1,0:T(8,128)}', space=vmem, size = 0x2000, scoped, tag = 'scratch operand']
  %s0 = inlined_call_operand.vmem [shape: f32[32,1024], index: 0, kind: input, shape index: {}]
  %s1 = inlined_call_operand.vmem [shape: f32[32,1], index: 1, kind: input, shape index: {}]
  %s2 = inlined_call_operand.vmem [shape: bf16[1024,256], index: 2, kind: input, shape index: {}]
  %s3 = inlined_call_operand.vmem [shape: f32[1,256], index: 3, kind: input, shape index: {}]
  %s4 = inlined_call_operand.vmem [shape: f32[1,256], index: 4, kind: input, shape index: {}]
  %s5 = inlined_call_operand.vmem [shape: bf16[32,256], index: 5, kind: output, shape index: {}]
  %s6 = sld [smem:[#allocation0]]
  $region162: #{byol_forward.2} parent=0
    _
  %s8 = ssub.s32 1, %s6
  %s9 = scalar_select 0, %s8, %s6
  $region1: #{byol_forward.2} parent=0
    #allocation3 [shape = 'u8[32768]{0}', space=vmem, size = 0x8000, scoped, tag = 'input window, operand 0']
    #allocation4 [shape = 'u8[131072]{0}', space=vmem, size = 0x20000, scoped, tag = 'input window, operand 2']
    #allocation5 [shape = 'u8[8192]{0}', space=vmem, size = 0x2000, scoped, tag = 'output window, operand 0']
    loop: start=0, step=1, limit=18
    $region2: #{byol_forward.2} parent=1 // loop_pre_header
      _
    $region3: #{byol_forward.2} parent=1 // loop_header
      %s11 = sphi 0, %s15
      %p12 = scmp.ge.s32.totalorder %s11, 18
      %s18 = sphi 0, %s37
      %s19 = sphi 0, %s33
      %s20 = sphi 0, %s29
      %s21 = sphi 0, %s18
      %s22 = sphi 0, %s19
      %s23 = sphi 0, %s20
      %s24 = sphi 0, %s21
      %s25 = sphi 0, %s22
      %s26 = sphi 0, %s23
      %s42 = sphi 0, %s44
      %s45 = sphi 0, %s42
      %s46 = sphi 0, %s45
      %s62 = sphi 0, %s46
      %s68 = sphi 0, %s70
      %s71 = sphi 0, %s68
      %s72 = sphi 0, %s71
      %s88 = sphi 0, %s72
      %s96 = sphi 0, %s98
      %s99 = sphi 0, %s96
      %s100 = sphi 0, %s99
      %s116 = sphi 0, %s100
      %s122 = sphi 0, %s124
      %s125 = sphi 0, %s122
      %s126 = sphi 0, %s125
      %s142 = sphi 0, %s126
      %s148 = sphi 0, %s150
      %s151 = sphi 0, %s148
      %s152 = sphi 0, %s151
      %s168 = sphi 0, %s152
      %s176 = sphi 0, %s178
      %s179 = sphi 0, %s176
      %s180 = sphi 0, %s179
      %s196 = sphi 0, %s180
    $region4: #{byol_forward.2} parent=1 // loop_header_branch
      %14 = sbr.rel (%p12) target = $region8
    $region5: #{byol_forward.2} parent=1 // loop_body
      %s16 = ssub.s32 %s11, 1
      %s17 = ssub.s32 %s11, 2
      %s27 = sadd.s32 1, %s20
      %p28 = scmp.ge.s32.totalorder %s27, 4
      %s29 = scalar_select %p28, 0, %s27
      %s30 = sadd.s32 1, %s19
      %s31 = scalar_select %p28, %s30, %s19
      %p32 = scmp.ge.s32.totalorder %s31, 2
      %s33 = scalar_select %p32, 0, %s31
      %s34 = sadd.s32 1, %s18
      %s35 = scalar_select %p32, %s34, %s18
      %p36 = scmp.ge.s32.totalorder %s35, 2
      %s37 = scalar_select %p36, 0, %s35
      %s38 = ssub.s32 %s18, %s37
      %s39 = ssub.s32 %s20, %s29
      %s40 = sor.u32 %s38, %s39
      %p41 = scmp.eq.s32.totalorder %s40, 0
      %s43 = sadd.s32 %s42, 1
      %s44 = scalar_select %p41, %s42, %s43
      %p47 = pneg %p41
      %p48 = scmp.eq.s32.totalorder %s11, 15
      %p49 = por %p47, %p48
      %p50 = scmp.ne.s32.totalorder %s42, %s45
      %p51 = scmp.eq.s32.totalorder %s11, 0
      %p52 = por %p50, %p51
      %p53 = scmp.ne.s32.totalorder %s42, %s45
      %p54 = scmp.eq.s32.totalorder %s16, 15
      %p55 = por %p53, %p54
      %p56 = scmp.ne.s32.totalorder %s45, %s46
      %p57 = scmp.eq.s32.totalorder %s16, 0
      %p58 = por %p56, %p57
      %p59 = scmp.ne.s32.totalorder %s45, %s46
      %p60 = scmp.eq.s32.totalorder %s17, 15
      %p61 = por %p59, %p60
      %p63 = scmp.ne.s32.totalorder %s46, %s62
      %p64 = scmp.eq.s32.totalorder %s17, 0
      %p65 = por %p63, %p64
      %s66 = ssub.s32 %s18, %s37
      %p67 = scmp.eq.s32.totalorder %s66, 0
      %s69 = sadd.s32 %s68, 1
      %s70 = scalar_select %p67, %s68, %s69
      %p73 = pneg %p67
      %p74 = scmp.eq.s32.totalorder %s11, 15
      %p75 = por %p73, %p74
      %p76 = scmp.ne.s32.totalorder %s68, %s71
      %p77 = scmp.eq.s32.totalorder %s11, 0
      %p78 = por %p76, %p77
      %p79 = scmp.ne.s32.totalorder %s68, %s71
      %p80 = scmp.eq.s32.totalorder %s16, 15
      %p81 = por %p79, %p80
      %p82 = scmp.ne.s32.totalorder %s71, %s72
      %p83 = scmp.eq.s32.totalorder %s16, 0
      %p84 = por %p82, %p83
      %p85 = scmp.ne.s32.totalorder %s71, %s72
      %p86 = scmp.eq.s32.totalorder %s17, 15
      %p87 = por %p85, %p86
      %p89 = scmp.ne.s32.totalorder %s72, %s88
      %p90 = scmp.eq.s32.totalorder %s17, 0
      %p91 = por %p89, %p90
      %s92 = ssub.s32 %s20, %s29
      %s93 = ssub.s32 %s19, %s33
      %s94 = sor.u32 %s92, %s93
      %p95 = scmp.eq.s32.totalorder %s94, 0
      %s97 = sadd.s32 %s96, 1
      %s98 = scalar_select %p95, %s96, %s97
      %p101 = pneg %p95
      %p102 = scmp.eq.s32.totalorder %s11, 15
      %p103 = por %p101, %p102
      %p104 = scmp.ne.s32.totalorder %s96, %s99
      %p105 = scmp.eq.s32.totalorder %s11, 0
      %p106 = por %p104, %p105
      %p107 = scmp.ne.s32.totalorder %s96, %s99
      %p108 = scmp.eq.s32.totalorder %s16, 15
      %p109 = por %p107, %p108
      %p110 = scmp.ne.s32.totalorder %s99, %s100
      %p111 = scmp.eq.s32.totalorder %s16, 0
      %p112 = por %p110, %p111
      %p113 = scmp.ne.s32.totalorder %s99, %s100
      %p114 = scmp.eq.s32.totalorder %s17, 15
      %p115 = por %p113, %p114
      %p117 = scmp.ne.s32.totalorder %s100, %s116
      %p118 = scmp.eq.s32.totalorder %s17, 0
      %p119 = por %p117, %p118
      %s120 = ssub.s32 %s19, %s33
      %p121 = scmp.eq.s32.totalorder %s120, 0
      %s123 = sadd.s32 %s122, 1
      %s124 = scalar_select %p121, %s122, %s123
      %p127 = pneg %p121
      %p128 = scmp.eq.s32.totalorder %s11, 15
      %p129 = por %p127, %p128
      %p130 = scmp.ne.s32.totalorder %s122, %s125
      %p131 = scmp.eq.s32.totalorder %s11, 0
      %p132 = por %p130, %p131
      %p133 = scmp.ne.s32.totalorder %s122, %s125
      %p134 = scmp.eq.s32.totalorder %s16, 15
      %p135 = por %p133, %p134
      %p136 = scmp.ne.s32.totalorder %s125, %s126
      %p137 = scmp.eq.s32.totalorder %s16, 0
      %p138 = por %p136, %p137
      %p139 = scmp.ne.s32.totalorder %s125, %s126
      %p140 = scmp.eq.s32.totalorder %s17, 15
      %p141 = por %p139, %p140
      %p143 = scmp.ne.s32.totalorder %s126, %s142
      %p144 = scmp.eq.s32.totalorder %s17, 0
      %p145 = por %p143, %p144
      %s146 = ssub.s32 %s19, %s33
      %p147 = scmp.eq.s32.totalorder %s146, 0
      %s149 = sadd.s32 %s148, 1
      %s150 = scalar_select %p147, %s148, %s149
      %p153 = pneg %p147
      %p154 = scmp.eq.s32.totalorder %s11, 15
      %p155 = por %p153, %p154
      %p156 = scmp.ne.s32.totalorder %s148, %s151
      %p157 = scmp.eq.s32.totalorder %s11, 0
      %p158 = por %p156, %p157
      %p159 = scmp.ne.s32.totalorder %s148, %s151
      %p160 = scmp.eq.s32.totalorder %s16, 15
      %p161 = por %p159, %p160
      %p162 = scmp.ne.s32.totalorder %s151, %s152
      %p163 = scmp.eq.s32.totalorder %s16, 0
      %p164 = por %p162, %p163
      %p165 = scmp.ne.s32.totalorder %s151, %s152
      %p166 = scmp.eq.s32.totalorder %s17, 15
      %p167 = por %p165, %p166
      %p169 = scmp.ne.s32.totalorder %s152, %s168
      %p170 = scmp.eq.s32.totalorder %s17, 0
      %p171 = por %p169, %p170
      %s172 = ssub.s32 %s18, %s37
      %s173 = ssub.s32 %s19, %s33
      %s174 = sor.u32 %s172, %s173
      %p175 = scmp.eq.s32.totalorder %s174, 0
      %s177 = sadd.s32 %s176, 1
      %s178 = scalar_select %p175, %s176, %s177
      %p181 = pneg %p175
      %p182 = scmp.eq.s32.totalorder %s11, 15
      %p183 = por %p181, %p182
      %p184 = scmp.ne.s32.totalorder %s176, %s179
      %p185 = scmp.eq.s32.totalorder %s11, 0
      %p186 = por %p184, %p185
      %p187 = scmp.ne.s32.totalorder %s176, %s179
      %p188 = scmp.eq.s32.totalorder %s16, 15
      %p189 = por %p187, %p188
      %p190 = scmp.ne.s32.totalorder %s179, %s180
      %p191 = scmp.eq.s32.totalorder %s16, 0
      %p192 = por %p190, %p191
      %p193 = scmp.ne.s32.totalorder %s179, %s180
      %p194 = scmp.eq.s32.totalorder %s17, 15
      %p195 = por %p193, %p194
      %p197 = scmp.ne.s32.totalorder %s180, %s196
      %p198 = scmp.eq.s32.totalorder %s17, 0
      %p199 = por %p197, %p198
      %p200 = scmp.le.s32.totalorder 1, %s11
      %p201 = scmp.lt.s32.totalorder %s11, 17
      %p202 = pnand %p200, %p201
      %p203 = pneg %p202
      // Predicated region
      $region9: #{byol_forward.2} parent=5 // pred_check
        _
      $region10: #{byol_forward.2} parent=5 // pred_check_branch
        %205 = sbr.rel (%p202) target = $region12
      $region11: #{byol_forward.2} parent=5 // pred_region
        %s206 = ssub.s32 %s11, 1
      $region12: #{byol_forward.2} parent=5 // pred_fallthru
        _
      %p207 = scmp.lt.s32.totalorder %s11, 16
      // Predicated region
      $region13: #{byol_forward.2} parent=5 // pred_check
        %p208 = pneg %p207
      $region14: #{byol_forward.2} parent=5 // pred_check_branch
        %210 = sbr.rel (%p208) target = $region16
      $region15: #{byol_forward.2} parent=5 // pred_region
        // Predicated region
        $region17: #{byol_forward.2} parent=15 // pred_check
          %p211 = pneg %p52
        $region18: #{byol_forward.2} parent=15 // pred_check_branch
          %213 = sbr.rel (%p211) target = $region20
        $region19: #{byol_forward.2} parent=15 // pred_region
          %s214 = sand.u32 %s42, 1
          %s215 = sand.u32 %s42, 1
          %s216 = smul.addr %s215, 32
          %s217 = scalar_lea.vmem [#allocation3], %s216
          %s218 = smul.u32 2, %s18
          %s219 = smul.u32 2, %s20
          %s220 = smul.addr %s218, 8
          %s221 = sadd.s32 %s219, %s220
          %s222 = smul.addr %s221, 8
          %s223 = scalar_lea.vmem %s0, %s222
          // Predicated region
          $region21: #{byol_forward.2} parent=19 // pred_check
            _
          $region22: #{byol_forward.2} parent=19 // pred_check_branch
            %225 = sbr.rel (0) target = $region24
          $region23: #{byol_forward.2} parent=19 // pred_region
            // Predicated region
            $region25: #{byol_forward.2} parent=23 // pred_check
              _
            $region26: #{byol_forward.2} parent=23 // pred_check_branch
              %227 = sbr.rel (0) target = $region28
            $region27: #{byol_forward.2} parent=23 // pred_region
              loop: start=0, step=1, limit=1
              $region29: #{byol_forward.2} parent=27 // loop_pre_header
                _
              $region30: #{byol_forward.2} parent=27 // loop_header
                %s229 = sphi 0, %s233
                %p230 = scmp.ge.s32.totalorder %s229, 1
                %s234 = sphi %s223, %s223
                %s235 = sphi %s217, %s217
              $region31: #{byol_forward.2} parent=27 // loop_header_branch
                %232 = sbr.rel (%p230) target = $region35
              $region32: #{byol_forward.2} parent=27 // loop_body
                %v236 = vld [vmem:[%s234] sm:$0xff]
                %237 = vst [vmem:[%s235] sm:$0xff] %v236
                %v238 = vld [vmem:[%s234 + $0x8] sm:$0xff]
                %239 = vst [vmem:[%s235 + $0x8] sm:$0xff] %v238
                %v240 = vld [vmem:[%s234 + $0x40] sm:$0xff]
                %241 = vst [vmem:[%s235 + $0x10] sm:$0xff] %v240
                %v242 = vld [vmem:[%s234 + $0x48] sm:$0xff]
                %243 = vst [vmem:[%s235 + $0x18] sm:$0xff] %v242
              $region33: #{byol_forward.2} parent=27 // loop_footer
                %s233 = sadd.s32 1, %s229
              $region34: #{byol_forward.2} parent=27 // loop_footer_branch
                %228 = sbr.rel target = $region30
              $region35: #{byol_forward.2} parent=27 // loop_exit
                _
            $region28: #{byol_forward.2} parent=23 // pred_fallthru
              _
            // Predicated region
            $region36: #{byol_forward.2} parent=23 // pred_check
              _
            $region37: #{byol_forward.2} parent=23 // pred_check_branch
              %245 = sbr.rel target = $region39
            $region38: #{byol_forward.2} parent=23 // pred_region
              _
            $region39: #{byol_forward.2} parent=23 // pred_fallthru
              _
          $region24: #{byol_forward.2} parent=19 // pred_fallthru
            _
          %246 = vnop
        $region20: #{byol_forward.2} parent=15 // pred_fallthru
          _
        // Predicated region
        $region40: #{byol_forward.2} parent=15 // pred_check
          %p247 = pneg %p78
        $region41: #{byol_forward.2} parent=15 // pred_check_branch
          %249 = sbr.rel (%p247) target = $region43
        $region42: #{byol_forward.2} parent=15 // pred_region
          %s250 = smul.u32 2, %s18
          %p251 = scmp.lt.s32.totalorder %s250, 3
          %s252 = scalar_select %p251, %s250, 3
          %s253 = smul.addr %s252, 8
          %s254 = scalar_lea.vmem %s1, %s253
          %s255 = smul.u32 2, %s18
        $region43: #{byol_forward.2} parent=15 // pred_fallthru
          _
        // Predicated region
        $region44: #{byol_forward.2} parent=15 // pred_check
          %p256 = pneg %p106
        $region45: #{byol_forward.2} parent=15 // pred_check_branch
          %258 = sbr.rel (%p256) target = $region47
        $region46: #{byol_forward.2} parent=15 // pred_region
          %s259 = sand.u32 %s96, 1
          %s260 = sand.u32 %s96, 1
          %s261 = smul.addr %s260, 128
          %s262 = scalar_lea.vmem [#allocation4], %s261
          %s263 = smul.u32 32, %s20
          %s264 = smul.addr %s263, 2
          %s265 = sadd.s32 %s19, %s264
          %s266 = smul.addr %s265, 4
          %s267 = scalar_lea.vmem %s2, %s266
          // Predicated region
          $region48: #{byol_forward.2} parent=46 // pred_check
            _
          $region49: #{byol_forward.2} parent=46 // pred_check_branch
            %269 = sbr.rel (0) target = $region51
          $region50: #{byol_forward.2} parent=46 // pred_region
            // Predicated region
            $region52: #{byol_forward.2} parent=50 // pred_check
              _
            $region53: #{byol_forward.2} parent=50 // pred_check_branch
              %271 = sbr.rel target = $region55
            $region54: #{byol_forward.2} parent=50 // pred_region
              // Predicated region
              $region67: #{byol_forward.2} parent=54 // pred_check
                _
              $region68: #{byol_forward.2} parent=54 // pred_check_branch
                %349 = sbr.rel (0) target = $region70
              $region69: #{byol_forward.2} parent=54 // pred_region
                loop: start=0, step=1, limit=1
                $region71: #{byol_forward.2} parent=69 // loop_pre_header
                  _
                $region72: #{byol_forward.2} parent=69 // loop_header
                  %s351 = sphi 0, %s355
                  %p352 = scmp.ge.s32.totalorder %s351, 1
                  %s356 = sphi %s267, %s267
                  %s357 = sphi %s262, %s262
                $region73: #{byol_forward.2} parent=69 // loop_header_branch
                  %354 = sbr.rel (%p352) target = $region77
                $region74: #{byol_forward.2} parent=69 // loop_body
                  _
                $region75: #{byol_forward.2} parent=69 // loop_footer
                  %s355 = sadd.s32 1, %s351
                $region76: #{byol_forward.2} parent=69 // loop_footer_branch
                  %350 = sbr.rel target = $region72
                $region77: #{byol_forward.2} parent=69 // loop_exit
                  _
                %s359 = ssub.s32 16, 1
                loop: start=0, step=1, limit=1
                $region78: #{byol_forward.2} parent=69 // loop_pre_header
                  _
                $region79: #{byol_forward.2} parent=69 // loop_header
                  %s361 = sphi 0, %s365
                  %p362 = scmp.ge.s32.totalorder %s361, 1
                  %s366 = sphi %s267, %s267
                  %s367 = sphi %s262, %s262
                $region80: #{byol_forward.2} parent=69 // loop_header_branch
                  %364 = sbr.rel (%p362) target = $region84
                $region81: #{byol_forward.2} parent=69 // loop_body
                  %v368 = vld [vmem:[%s366] sm:%s359]
                  %369 = vst [vmem:[%s367] sm:%s359] %v368
                  %v370 = vld [vmem:[%s366 + $0x8] sm:%s359]
                  %371 = vst [vmem:[%s367 + $0x4] sm:%s359] %v370
                  %v372 = vld [vmem:[%s366 + $0x10] sm:%s359]
                  %373 = vst [vmem:[%s367 + $0x8] sm:%s359] %v372
                  %v374 = vld [vmem:[%s366 + $0x18] sm:%s359]
                  %375 = vst [vmem:[%s367 + $0xc] sm:%s359] %v374
                  %v376 = vld [vmem:[%s366 + $0x20] sm:%s359]
                  %377 = vst [vmem:[%s367 + $0x10] sm:%s359] %v376
                  %v378 = vld [vmem:[%s366 + $0x28] sm:%s359]
                  %379 = vst [vmem:[%s367 + $0x14] sm:%s359] %v378
                  %v380 = vld [vmem:[%s366 + $0x30] sm:%s359]
                  %381 = vst [vmem:[%s367 + $0x18] sm:%s359] %v380
                  %v382 = vld [vmem:[%s366 + $0x38] sm:%s359]
                  %383 = vst [vmem:[%s367 + $0x1c] sm:%s359] %v382
                  %v384 = vld [vmem:[%s366 + $0x40] sm:%s359]
                  %385 = vst [vmem:[%s367 + $0x20] sm:%s359] %v384
                  %v386 = vld [vmem:[%s366 + $0x48] sm:%s359]
                  %387 = vst [vmem:[%s367 + $0x24] sm:%s359] %v386
                  %v388 = vld [vmem:[%s366 + $0x50] sm:%s359]
                  %389 = vst [vmem:[%s367 + $0x28] sm:%s359] %v388
                  %v390 = vld [vmem:[%s366 + $0x58] sm:%s359]
                  %391 = vst [vmem:[%s367 + $0x2c] sm:%s359] %v390
                  %v392 = vld [vmem:[%s366 + $0x60] sm:%s359]
                  %393 = vst [vmem:[%s367 + $0x30] sm:%s359] %v392
                  %v394 = vld [vmem:[%s366 + $0x68] sm:%s359]
                  %395 = vst [vmem:[%s367 + $0x34] sm:%s359] %v394
                  %v396 = vld [vmem:[%s366 + $0x70] sm:%s359]
                  %397 = vst [vmem:[%s367 + $0x38] sm:%s359] %v396
                  %v398 = vld [vmem:[%s366 + $0x78] sm:%s359]
                  %399 = vst [vmem:[%s367 + $0x3c] sm:%s359] %v398
                  %v400 = vld [vmem:[%s366 + $0x80] sm:%s359]
                  %401 = vst [vmem:[%s367 + $0x40] sm:%s359] %v400
                  %v402 = vld [vmem:[%s366 + $0x88] sm:%s359]
                  %403 = vst [vmem:[%s367 + $0x44] sm:%s359] %v402
                  %v404 = vld [vmem:[%s366 + $0x90] sm:%s359]
                  %405 = vst [vmem:[%s367 + $0x48] sm:%s359] %v404
                  %v406 = vld [vmem:[%s366 + $0x98] sm:%s359]
                  %407 = vst [vmem:[%s367 + $0x4c] sm:%s359] %v406
                  %v408 = vld [vmem:[%s366 + $0xa0] sm:%s359]
                  %409 = vst [vmem:[%s367 + $0x50] sm:%s359] %v408
                  %v410 = vld [vmem:[%s366 + $0xa8] sm:%s359]
                  %411 = vst [vmem:[%s367 + $0x54] sm:%s359] %v410
                  %v412 = vld [vmem:[%s366 + $0xb0] sm:%s359]
                  %413 = vst [vmem:[%s367 + $0x58] sm:%s359] %v412
                  %v414 = vld [vmem:[%s366 + $0xb8] sm:%s359]
                  %415 = vst [vmem:[%s367 + $0x5c] sm:%s359] %v414
                  %v416 = vld [vmem:[%s366 + $0xc0] sm:%s359]
                  %417 = vst [vmem:[%s367 + $0x60] sm:%s359] %v416
                  %v418 = vld [vmem:[%s366 + $0xc8] sm:%s359]
                  %419 = vst [vmem:[%s367 + $0x64] sm:%s359] %v418
                  %v420 = vld [vmem:[%s366 + $0xd0] sm:%s359]
                  %421 = vst [vmem:[%s367 + $0x68] sm:%s359] %v420
                  %v422 = vld [vmem:[%s366 + $0xd8] sm:%s359]
                  %423 = vst [vmem:[%s367 + $0x6c] sm:%s359] %v422
                  %v424 = vld [vmem:[%s366 + $0xe0] sm:%s359]
                  %425 = vst [vmem:[%s367 + $0x70] sm:%s359] %v424
                  %v426 = vld [vmem:[%s366 + $0xe8] sm:%s359]
                  %427 = vst [vmem:[%s367 + $0x74] sm:%s359] %v426
                  %v428 = vld [vmem:[%s366 + $0xf0] sm:%s359]
                  %429 = vst [vmem:[%s367 + $0x78] sm:%s359] %v428
                  %v430 = vld [vmem:[%s366 + $0xf8] sm:%s359]
                  %431 = vst [vmem:[%s367 + $0x7c] sm:%s359] %v430
                $region82: #{byol_forward.2} parent=69 // loop_footer
                  %s365 = sadd.s32 1, %s361
                $region83: #{byol_forward.2} parent=69 // loop_footer_branch
                  %360 = sbr.rel target = $region79
                $region84: #{byol_forward.2} parent=69 // loop_exit
                  _
              $region70: #{byol_forward.2} parent=54 // pred_fallthru
                _
            $region55: #{byol_forward.2} parent=50 // pred_fallthru
              _
            // Predicated region
            $region56: #{byol_forward.2} parent=50 // pred_check
              _
            $region57: #{byol_forward.2} parent=50 // pred_check_branch
              %273 = sbr.rel (0) target = $region59
            $region58: #{byol_forward.2} parent=50 // pred_region
              %s275 = ssub.s32 16, 1
              loop: start=0, step=1, limit=1
              $region60: #{byol_forward.2} parent=58 // loop_pre_header
                _
              $region61: #{byol_forward.2} parent=58 // loop_header
                %s277 = sphi 0, %s281
                %p278 = scmp.ge.s32.totalorder %s277, 1
                %s282 = sphi %s267, %s267
                %s283 = sphi %s262, %s262
              $region62: #{byol_forward.2} parent=58 // loop_header_branch
                %280 = sbr.rel (%p278) target = $region66
              $region63: #{byol_forward.2} parent=58 // loop_body
                %v284 = vld [vmem:[%s282] sm:%s275]
                %285 = vst [vmem:[%s283] sm:%s275] %v284
                %v286 = vld [vmem:[%s282 + $0x8] sm:%s275]
                %287 = vst [vmem:[%s283 + $0x4] sm:%s275] %v286
                %v288 = vld [vmem:[%s282 + $0x10] sm:%s275]
                %289 = vst [vmem:[%s283 + $0x8] sm:%s275] %v288
                %v290 = vld [vmem:[%s282 + $0x18] sm:%s275]
                %291 = vst [vmem:[%s283 + $0xc] sm:%s275] %v290
                %v292 = vld [vmem:[%s282 + $0x20] sm:%s275]
                %293 = vst [vmem:[%s283 + $0x10] sm:%s275] %v292
                %v294 = vld [vmem:[%s282 + $0x28] sm:%s275]
                %295 = vst [vmem:[%s283 + $0x14] sm:%s275] %v294
                %v296 = vld [vmem:[%s282 + $0x30] sm:%s275]
                %297 = vst [vmem:[%s283 + $0x18] sm:%s275] %v296
                %v298 = vld [vmem:[%s282 + $0x38] sm:%s275]
                %299 = vst [vmem:[%s283 + $0x1c] sm:%s275] %v298
                %v300 = vld [vmem:[%s282 + $0x40] sm:%s275]
                %301 = vst [vmem:[%s283 + $0x20] sm:%s275] %v300
                %v302 = vld [vmem:[%s282 + $0x48] sm:%s275]
                %303 = vst [vmem:[%s283 + $0x24] sm:%s275] %v302
                %v304 = vld [vmem:[%s282 + $0x50] sm:%s275]
                %305 = vst [vmem:[%s283 + $0x28] sm:%s275] %v304
                %v306 = vld [vmem:[%s282 + $0x58] sm:%s275]
                %307 = vst [vmem:[%s283 + $0x2c] sm:%s275] %v306
                %v308 = vld [vmem:[%s282 + $0x60] sm:%s275]
                %309 = vst [vmem:[%s283 + $0x30] sm:%s275] %v308
                %v310 = vld [vmem:[%s282 + $0x68] sm:%s275]
                %311 = vst [vmem:[%s283 + $0x34] sm:%s275] %v310
                %v312 = vld [vmem:[%s282 + $0x70] sm:%s275]
                %313 = vst [vmem:[%s283 + $0x38] sm:%s275] %v312
                %v314 = vld [vmem:[%s282 + $0x78] sm:%s275]
                %315 = vst [vmem:[%s283 + $0x3c] sm:%s275] %v314
                %v316 = vld [vmem:[%s282 + $0x80] sm:%s275]
                %317 = vst [vmem:[%s283 + $0x40] sm:%s275] %v316
                %v318 = vld [vmem:[%s282 + $0x88] sm:%s275]
                %319 = vst [vmem:[%s283 + $0x44] sm:%s275] %v318
                %v320 = vld [vmem:[%s282 + $0x90] sm:%s275]
                %321 = vst [vmem:[%s283 + $0x48] sm:%s275] %v320
                %v322 = vld [vmem:[%s282 + $0x98] sm:%s275]
                %323 = vst [vmem:[%s283 + $0x4c] sm:%s275] %v322
                %v324 = vld [vmem:[%s282 + $0xa0] sm:%s275]
                %325 = vst [vmem:[%s283 + $0x50] sm:%s275] %v324
                %v326 = vld [vmem:[%s282 + $0xa8] sm:%s275]
                %327 = vst [vmem:[%s283 + $0x54] sm:%s275] %v326
                %v328 = vld [vmem:[%s282 + $0xb0] sm:%s275]
                %329 = vst [vmem:[%s283 + $0x58] sm:%s275] %v328
                %v330 = vld [vmem:[%s282 + $0xb8] sm:%s275]
                %331 = vst [vmem:[%s283 + $0x5c] sm:%s275] %v330
                %v332 = vld [vmem:[%s282 + $0xc0] sm:%s275]
                %333 = vst [vmem:[%s283 + $0x60] sm:%s275] %v332
                %v334 = vld [vmem:[%s282 + $0xc8] sm:%s275]
                %335 = vst [vmem:[%s283 + $0x64] sm:%s275] %v334
                %v336 = vld [vmem:[%s282 + $0xd0] sm:%s275]
                %337 = vst [vmem:[%s283 + $0x68] sm:%s275] %v336
                %v338 = vld [vmem:[%s282 + $0xd8] sm:%s275]
                %339 = vst [vmem:[%s283 + $0x6c] sm:%s275] %v338
                %v340 = vld [vmem:[%s282 + $0xe0] sm:%s275]
                %341 = vst [vmem:[%s283 + $0x70] sm:%s275] %v340
                %v342 = vld [vmem:[%s282 + $0xe8] sm:%s275]
                %343 = vst [vmem:[%s283 + $0x74] sm:%s275] %v342
                %v344 = vld [vmem:[%s282 + $0xf0] sm:%s275]
                %345 = vst [vmem:[%s283 + $0x78] sm:%s275] %v344
                %v346 = vld [vmem:[%s282 + $0xf8] sm:%s275]
                %347 = vst [vmem:[%s283 + $0x7c] sm:%s275] %v346
              $region64: #{byol_forward.2} parent=58 // loop_footer
                %s281 = sadd.s32 1, %s277
              $region65: #{byol_forward.2} parent=58 // loop_footer_branch
                %276 = sbr.rel target = $region61
              $region66: #{byol_forward.2} parent=58 // loop_exit
                _
            $region59: #{byol_forward.2} parent=50 // pred_fallthru
              _
          $region51: #{byol_forward.2} parent=46 // pred_fallthru
            _
          %432 = vnop
        $region47: #{byol_forward.2} parent=15 // pred_fallthru
          _
        // Predicated region
        $region85: #{byol_forward.2} parent=15 // pred_check
          %p433 = pneg %p132
        $region86: #{byol_forward.2} parent=15 // pred_check_branch
          %435 = sbr.rel (%p433) target = $region88
        $region87: #{byol_forward.2} parent=15 // pred_region
          %p436 = scmp.lt.s32.totalorder %s19, 1
          %s437 = scalar_select %p436, %s19, 1
          %s438 = scalar_lea.vmem %s3, %s437
        $region88: #{byol_forward.2} parent=15 // pred_fallthru
          _
        // Predicated region
        $region89: #{byol_forward.2} parent=15 // pred_check
          %p439 = pneg %p158
        $region90: #{byol_forward.2} parent=15 // pred_check_branch
          %441 = sbr.rel (%p439) target = $region92
        $region91: #{byol_forward.2} parent=15 // pred_region
          %p442 = scmp.lt.s32.totalorder %s19, 1
          %s443 = scalar_select %p442, %s19, 1
          %s444 = scalar_lea.vmem %s4, %s443
        $region92: #{byol_forward.2} parent=15 // pred_fallthru
          _
      $region16: #{byol_forward.2} parent=5 // pred_fallthru
        _
      %p445 = scmp.le.s32.totalorder 1, %s11
      %p446 = scmp.lt.s32.totalorder %s11, 17
      %p447 = pnand %p445, %p446
      %p448 = pneg %p447
      // Predicated region
      $region93: #{byol_forward.2} parent=5 // pred_check
        _
      $region94: #{byol_forward.2} parent=5 // pred_check_branch
        %450 = sbr.rel (%p447) target = $region96
      $region95: #{byol_forward.2} parent=5 // pred_region
        %s451 = ssub.s32 %s11, 1
        %s452 = sand.u32 %s45, 1
        %s453 = sand.u32 %s45, 1
        %s454 = smul.addr %s453, 32
        %s455 = scalar_lea.vmem [#allocation3], %s454
        // Predicated region
        $region97: #{byol_forward.2} parent=95 // pred_check
          %p456 = pneg %p58
        $region98: #{byol_forward.2} parent=95 // pred_check_branch
          %458 = sbr.rel (%p456) target = $region100
        $region99: #{byol_forward.2} parent=95 // pred_region
          _
        $region100: #{byol_forward.2} parent=95 // pred_fallthru
          _
        %s459 = sand.u32 %s99, 1
        %s460 = sand.u32 %s99, 1
        %s461 = smul.addr %s460, 128
        %s462 = scalar_lea.vmem [#allocation4], %s461
        // Predicated region
        $region101: #{byol_forward.2} parent=95 // pred_check
          %p463 = pneg %p112
        $region102: #{byol_forward.2} parent=95 // pred_check_branch
          %465 = sbr.rel (%p463) target = $region104
        $region103: #{byol_forward.2} parent=95 // pred_region
          _
        $region104: #{byol_forward.2} parent=95 // pred_fallthru
          _
        %s466 = sand.u32 %s45, 1
        %s467 = sand.u32 %s45, 1
        %s468 = smul.addr %s467, 32
        %s469 = scalar_lea.vmem [#allocation3], %s468
        %p470 = pneg %p58
        %p471 = pneg %p55
        %s472 = smul.u32 2, %s21
        %p473 = scmp.lt.s32.totalorder %s472, 3
        %s474 = scalar_select %p473, %s472, 3
        %s475 = smul.addr %s474, 8
        %s476 = scalar_lea.vmem %s1, %s475
        %p477 = pneg %p84
        %p478 = pneg %p81
        %s479 = sand.u32 %s99, 1
        %s480 = sand.u32 %s99, 1
        %s481 = smul.addr %s480, 128
        %s482 = scalar_lea.vmem [#allocation4], %s481
        %p483 = pneg %p112
        %p484 = pneg %p109
        %p485 = scmp.lt.s32.totalorder %s22, 1
        %s486 = scalar_select %p485, %s22, 1
        %s487 = scalar_lea.vmem %s3, %s486
        %p488 = pneg %p138
        %p489 = pneg %p135
        %p490 = scmp.lt.s32.totalorder %s22, 1
        %s491 = scalar_select %p490, %s22, 1
        %s492 = scalar_lea.vmem %s4, %s491
        %p493 = pneg %p164
        %p494 = pneg %p161
        %p495 = pneg %p192
        %p496 = pneg %p189
        %s497 = sand.u32 %s179, 1
        %s498 = sand.u32 %s179, 1
        %s499 = smul.addr %s498, 8
        %s500 = scalar_lea.vmem [#allocation5], %s499
        %s501 = smul.u32 2, %s21
        %s502 = smul.u32 2, %s23
        %s503 = smul.u32 2, %s21
        %p504 = scmp.lt.s32.totalorder %s503, 3
        %s505 = scalar_select %p504, %s503, 3
        %s506 = smul.addr %s505, 8
        %s507 = scalar_lea.vmem %s1, %s506
        %s508 = smul.u32 2, %s21
        %s509 = smul.u32 32, %s23
        %p510 = scmp.lt.s32.totalorder %s22, 1
        %s511 = scalar_select %p510, %s22, 1
        %s512 = scalar_lea.vmem %s3, %s511
        %p513 = scmp.lt.s32.totalorder %s22, 1
        %s514 = scalar_select %p513, %s22, 1
        %s515 = scalar_lea.vmem %s4, %s514
        %s516 = smul.u32 2, %s21
        %p518 = scmp.eq.s32.totalorder %s23, 0
        // Predicated region
        $region105: #{byol_forward.2} parent=95 // pred_check
          %p519 = pneg %p518
        $region106: #{byol_forward.2} parent=95 // pred_check_branch
          %521 = sbr.rel (%p519) target = $region108
        $region107: #{byol_forward.2} parent=95 // pred_region
          %522 = vst [vmem:[#allocation2] sm:$0xff] 0.0
          %523 = vst [vmem:[#allocation2 + $0x8] sm:$0xff] 0.0
        $region108: #{byol_forward.2} parent=95 // pred_fallthru
          _
        %v524 = vld [vmem:[#allocation2] sm:$0xff]
        %v525 = vld [vmem:[#allocation2 + $0x8] sm:$0xff]
        %v526 = vld [vmem:[%s455] sm:$0xff]
        %v527 = vld [vmem:[%s455 + $0x8] sm:$0xff]
        %v528 = vld [vmem:[%s455 + $0x10] sm:$0xff]
        %v529 = vld [vmem:[%s455 + $0x18] sm:$0xff]
        %v530 = vpack.c.bf16 %v528, %v526
        %v531 = vpack.c.bf16 %v529, %v527
        %v532 = vld [vmem:[%s462] sm:$0xf]
        %v533 = vld [vmem:[%s462 + $0x4] sm:$0xf]
        %v534 = vld [vmem:[%s462 + $0x8] sm:$0xf]
        %v535 = vld [vmem:[%s462 + $0xc] sm:$0xf]
        %v536 = vld [vmem:[%s462 + $0x10] sm:$0xf]
        %v537 = vld [vmem:[%s462 + $0x14] sm:$0xf]
        %v538 = vld [vmem:[%s462 + $0x18] sm:$0xf]
        %v539 = vld [vmem:[%s462 + $0x1c] sm:$0xf]
        %v540 = vld [vmem:[%s462 + $0x20] sm:$0xf]
        %v541 = vld [vmem:[%s462 + $0x24] sm:$0xf]
        %v542 = vld [vmem:[%s462 + $0x28] sm:$0xf]
        %v543 = vld [vmem:[%s462 + $0x2c] sm:$0xf]
        %v544 = vld [vmem:[%s462 + $0x30] sm:$0xf]
        %v545 = vld [vmem:[%s462 + $0x34] sm:$0xf]
        %v546 = vld [vmem:[%s462 + $0x38] sm:$0xf]
        %v547 = vld [vmem:[%s462 + $0x3c] sm:$0xf]
        %v548 = vld [vmem:[%s462 + $0x40] sm:$0xf]
        %v549 = vld [vmem:[%s462 + $0x44] sm:$0xf]
        %v550 = vld [vmem:[%s462 + $0x48] sm:$0xf]
        %v551 = vld [vmem:[%s462 + $0x4c] sm:$0xf]
        %v552 = vld [vmem:[%s462 + $0x50] sm:$0xf]
        %v553 = vld [vmem:[%s462 + $0x54] sm:$0xf]
        %v554 = vld [vmem:[%s462 + $0x58] sm:$0xf]
        %v555 = vld [vmem:[%s462 + $0x5c] sm:$0xf]
        %v556 = vld [vmem:[%s462 + $0x60] sm:$0xf]
        %v557 = vld [vmem:[%s462 + $0x64] sm:$0xf]
        %v558 = vld [vmem:[%s462 + $0x68] sm:$0xf]
        %v559 = vld [vmem:[%s462 + $0x6c] sm:$0xf]
        %v560 = vld [vmem:[%s462 + $0x70] sm:$0xf]
        %v561 = vld [vmem:[%s462 + $0x74] sm:$0xf]
        %v562 = vld [vmem:[%s462 + $0x78] sm:$0xf]
        %v563 = vld [vmem:[%s462 + $0x7c] sm:$0xf]
        %v596 = vunpack.c.l.b16 %v532
        %v597 = vunpack.c.l.b16 %v533
        %v598 = vunpack.c.l.b16 %v534
        %v599 = vunpack.c.l.b16 %v535
        %v600 = vunpack.c.l.b16 %v536
        %v601 = vunpack.c.l.b16 %v537
        %v602 = vunpack.c.l.b16 %v538
        %v603 = vunpack.c.l.b16 %v539
        %v604 = vunpack.c.l.b16 %v540
        %v605 = vunpack.c.l.b16 %v541
        %v606 = vunpack.c.l.b16 %v542
        %v607 = vunpack.c.l.b16 %v543
        %v608 = vunpack.c.l.b16 %v544
        %v609 = vunpack.c.l.b16 %v545
        %v610 = vunpack.c.l.b16 %v546
        %v611 = vunpack.c.l.b16 %v547
        %v612 = vunpack.c.l.b16 %v548
        %v613 = vunpack.c.l.b16 %v549
        %v614 = vunpack.c.l.b16 %v550
        %v615 = vunpack.c.l.b16 %v551
        %v616 = vunpack.c.l.b16 %v552
        %v617 = vunpack.c.l.b16 %v553
        %v618 = vunpack.c.l.b16 %v554
        %v619 = vunpack.c.l.b16 %v555
        %v620 = vunpack.c.l.b16 %v556
        %v621 = vunpack.c.l.b16 %v557
        %v622 = vunpack.c.l.b16 %v558
        %v623 = vunpack.c.l.b16 %v559
        %v624 = vunpack.c.l.b16 %v560
        %v625 = vunpack.c.l.b16 %v561
        %v626 = vunpack.c.l.b16 %v562
        %v627 = vunpack.c.l.b16 %v563
        %v628 = vpack.c.b16 %v597, %v596
        %v629 = vpack.c.b16 %v599, %v598
        %v630 = vpack.c.b16 %v601, %v600
        %v631 = vpack.c.b16 %v603, %v602
        %v632 = vpack.c.b16 %v605, %v604
        %v633 = vpack.c.b16 %v607, %v606
        %v634 = vpack.c.b16 %v609, %v608
        %v635 = vpack.c.b16 %v611, %v610
        %v636 = vpack.c.b16 %v613, %v612
        %v637 = vpack.c.b16 %v615, %v614
        %v638 = vpack.c.b16 %v617, %v616
        %v639 = vpack.c.b16 %v619, %v618
        %v640 = vpack.c.b16 %v621, %v620
        %v641 = vpack.c.b16 %v623, %v622
        %v642 = vpack.c.b16 %v625, %v624
        %v643 = vpack.c.b16 %v627, %v626
        %660 = vmatprep.subr.bf16.mxu0 0
        %661 = vmatpush1.bf16.msra.mxu0 %v635
        %662 = vmatprep.subr.bf16.mxu0 0
        %663 = vmatpush1.bf16.msra.mxu0 %v634
        %664 = vmatprep.subr.bf16.mxu0 0
        %665 = vmatpush1.bf16.msra.mxu0 %v633
        %666 = vmatprep.subr.bf16.mxu0 0
        %667 = vmatpush1.bf16.msra.mxu0 %v632
        %668 = vmatprep.subr.bf16.mxu0 0
        %669 = vmatpush1.bf16.msra.mxu0 %v631
        %670 = vmatprep.subr.bf16.mxu0 0
        %671 = vmatpush1.bf16.msra.mxu0 %v630
        %672 = vmatprep.subr.bf16.mxu0 0
        %673 = vmatpush1.bf16.msra.mxu0 %v629
        %674 = vmatprep.subr.bf16.mxu0 0
        %675 = vmatpush1.bf16.msra.mxu0 %v628
        %676 = vmatprep.subr.bf16.mxu0 0
        %677 = vmatpush2.bf16.msra.mxu0 %v643
        %678 = vmatprep.subr.bf16.mxu0 0
        %679 = vmatpush2.bf16.msra.mxu0 %v642
        %680 = vmatprep.subr.bf16.mxu0 0
        %681 = vmatpush2.bf16.msra.mxu0 %v641
        %682 = vmatprep.subr.bf16.mxu0 0
        %683 = vmatpush2.bf16.msra.mxu0 %v640
        %684 = vmatprep.subr.bf16.mxu0 0
        %685 = vmatpush2.bf16.msra.mxu0 %v639
        %686 = vmatprep.subr.bf16.mxu0 0
        %687 = vmatpush2.bf16.msra.mxu0 %v638
        %688 = vmatprep.subr.bf16.mxu0 0
        %689 = vmatpush2.bf16.msra.mxu0 %v637
        %690 = vmatprep.subr.bf16.mxu0 0
        %691 = vmatpush2.bf16.msra.mxu0 %v636
        %692 = vmatprep.mubr.bf16.mxu0 %v531
        %693 = vmatmul.mubr.bf16.gmra.mxu0 %v530
        %v694 = vpop.f32.mrf.mxu0
        %v695 = vadd.f32 0.0, %v694
        %v696 = vpop.f32.mrf.mxu0
        %v697 = vpop.f32.mrf.mxu0
        %v698 = vadd.f32 0.0, %v697
        %v699 = vpop.f32.mrf.mxu0
        %700 = vdwg.mxu0
        %v701 = vadd.f32 %v524, %v695
        %v702 = vadd.f32 %v525, %v698
        %703 = vst [vmem:[#allocation2] sm:$0xff] %v701
        %704 = vst [vmem:[#allocation2 + $0x8] sm:$0xff] %v702
        %p705 = scmp.eq.s32.totalorder %s23, 3
        // Predicated region
        $region109: #{byol_forward.2} parent=95 // pred_check
          %p706 = pneg %p705
        $region110: #{byol_forward.2} parent=95 // pred_check_branch
          %708 = sbr.rel (%p706) target = $region112
        $region111: #{byol_forward.2} parent=95 // pred_region
          %v709 = vld [vmem:[#allocation2] sm:$0xff]
          %v710 = vld [vmem:[#allocation2 + $0x8] sm:$0xff]
          %v711 = vld [vmem:[%s512] sm:$0x1]
          %v713 = vlaneseq
          %v714 = vshrl.u32 %v713, 7
          %v715 = vsub.s32 0, %v714
          %v716 = vrot.slane %v711, %v715
          %v718 = vadd.f32 %v709, %v716
          %v719 = vadd.f32 %v710, %v716
          %v720 = vld [vmem:[%s507] sm:$0xff]
          %v721 = vld [vmem:[%s507 + $0x8] sm:$0xff]
          %v722 = vld [vmem:[%s515] sm:$0x1]
          %724 = vset.pattern.permute.xlu0 0
          %725 = vperm.xlu0 %724, %v720
          %v726 = vpop.permute.xlu0 %725
          %729 = vset.pattern.permute.xlu0 0
          %730 = vperm.xlu0 %729, %v721
          %v731 = vpop.permute.xlu0 %730
          %v734 = vlaneseq
          %v735 = vshrl.u32 %v734, 7
          %v736 = vsub.s32 0, %v735
          %v737 = vrot.slane %v722, %v736
          %v739 = vmul.f32 %v726, %v737
          %v740 = vmul.f32 %v731, %v737
          %v741 = vadd.f32 %v718, %v739
          %v742 = vadd.f32 %v719, %v740
          %v743 = vmax.f32 %v741, 0.0
          %v744 = vmax.f32 %v742, 0.0
          %v745 = vpack.c.bf16 %v744, %v743
          %v747 = vunpack.c.l.b16 %v745
          %v748 = vunpack.c.h.b16 %v745
          %v749 = vpack.c.b16 %v747, %v747
          %v750 = vpack.c.b16 %v748, %v748
          %753 = vst [vmem:[%s500] sm:$0xf] %v749
          %754 = vst [vmem:[%s500 + $0x4] sm:$0xf] %v750
        $region112: #{byol_forward.2} parent=95 // pred_fallthru
          _
        %s755 = sand.u32 %s179, 1
        %s756 = sand.u32 %s179, 1
        %s757 = smul.addr %s756, 8
        %s758 = scalar_lea.vmem [#allocation5], %s757
        // Predicated region
        $region113: #{byol_forward.2} parent=95 // pred_check
          %p759 = pneg %p189
        $region114: #{byol_forward.2} parent=95 // pred_check_branch
          %761 = sbr.rel (%p759) target = $region116
        $region115: #{byol_forward.2} parent=95 // pred_region
          %s762 = smul.u32 2, %s21
          %s763 = smul.addr %s762, 2
          %s764 = sadd.s32 %s22, %s763
          %s765 = smul.addr %s764, 4
          %s766 = scalar_lea.vmem %s5, %s765
          // Predicated region
          $region117: #{byol_forward.2} parent=115 // pred_check
            _
          $region118: #{byol_forward.2} parent=115 // pred_check_branch
            %768 = sbr.rel (0) target = $region120
          $region119: #{byol_forward.2} parent=115 // pred_region
            // Predicated region
            $region121: #{byol_forward.2} parent=119 // pred_check
              _
            $region122: #{byol_forward.2} parent=119 // pred_check_branch
              %770 = sbr.rel target = $region124
            $region123: #{byol_forward.2} parent=119 // pred_region
              // Predicated region
              $region136: #{byol_forward.2} parent=123 // pred_check
                _
              $region137: #{byol_forward.2} parent=123 // pred_check_branch
                %788 = sbr.rel (0) target = $region139
              $region138: #{byol_forward.2} parent=123 // pred_region
                loop: start=0, step=1, limit=1
                $region140: #{byol_forward.2} parent=138 // loop_pre_header
                  _
                $region141: #{byol_forward.2} parent=138 // loop_header
                  %s790 = sphi 0, %s794
                  %p791 = scmp.ge.s32.totalorder %s790, 1
                  %s795 = sphi %s758, %s758
                  %s796 = sphi %s766, %s766
                $region142: #{byol_forward.2} parent=138 // loop_header_branch
                  %793 = sbr.rel (%p791) target = $region146
                $region143: #{byol_forward.2} parent=138 // loop_body
                  _
                $region144: #{byol_forward.2} parent=138 // loop_footer
                  %s794 = sadd.s32 1, %s790
                $region145: #{byol_forward.2} parent=138 // loop_footer_branch
                  %789 = sbr.rel target = $region141
                $region146: #{byol_forward.2} parent=138 // loop_exit
                  _
                %s798 = ssub.s32 16, 1
                loop: start=0, step=1, limit=1
                $region147: #{byol_forward.2} parent=138 // loop_pre_header
                  _
                $region148: #{byol_forward.2} parent=138 // loop_header
                  %s800 = sphi 0, %s804
                  %p801 = scmp.ge.s32.totalorder %s800, 1
                  %s805 = sphi %s758, %s758
                  %s806 = sphi %s766, %s766
                $region149: #{byol_forward.2} parent=138 // loop_header_branch
                  %803 = sbr.rel (%p801) target = $region153
                $region150: #{byol_forward.2} parent=138 // loop_body
                  %v807 = vld [vmem:[%s805] sm:%s798]
                  %808 = vst [vmem:[%s806] sm:%s798] %v807
                  %v809 = vld [vmem:[%s805 + $0x4] sm:%s798]
                  %810 = vst [vmem:[%s806 + $0x8] sm:%s798] %v809
                $region151: #{byol_forward.2} parent=138 // loop_footer
                  %s804 = sadd.s32 1, %s800
                $region152: #{byol_forward.2} parent=138 // loop_footer_branch
                  %799 = sbr.rel target = $region148
                $region153: #{byol_forward.2} parent=138 // loop_exit
                  _
              $region139: #{byol_forward.2} parent=123 // pred_fallthru
                _
            $region124: #{byol_forward.2} parent=119 // pred_fallthru
              _
            // Predicated region
            $region125: #{byol_forward.2} parent=119 // pred_check
              _
            $region126: #{byol_forward.2} parent=119 // pred_check_branch
              %772 = sbr.rel (0) target = $region128
            $region127: #{byol_forward.2} parent=119 // pred_region
              %s774 = ssub.s32 16, 1
              loop: start=0, step=1, limit=1
              $region129: #{byol_forward.2} parent=127 // loop_pre_header
                _
              $region130: #{byol_forward.2} parent=127 // loop_header
                %s776 = sphi 0, %s780
                %p777 = scmp.ge.s32.totalorder %s776, 1
                %s781 = sphi %s758, %s758
                %s782 = sphi %s766, %s766
              $region131: #{byol_forward.2} parent=127 // loop_header_branch
                %779 = sbr.rel (%p777) target = $region135
              $region132: #{byol_forward.2} parent=127 // loop_body
                %v783 = vld [vmem:[%s781] sm:%s774]
                %784 = vst [vmem:[%s782] sm:%s774] %v783
                %v785 = vld [vmem:[%s781 + $0x4] sm:%s774]
                %786 = vst [vmem:[%s782 + $0x8] sm:%s774] %v785
              $region133: #{byol_forward.2} parent=127 // loop_footer
                %s780 = sadd.s32 1, %s776
              $region134: #{byol_forward.2} parent=127 // loop_footer_branch
                %775 = sbr.rel target = $region130
              $region135: #{byol_forward.2} parent=127 // loop_exit
                _
            $region128: #{byol_forward.2} parent=119 // pred_fallthru
              _
          $region120: #{byol_forward.2} parent=115 // pred_fallthru
            _
          %811 = vnop
        $region116: #{byol_forward.2} parent=95 // pred_fallthru
          _
      $region96: #{byol_forward.2} parent=5 // pred_fallthru
        _
      %p812 = scmp.le.s32.totalorder 2, %s11
      // Predicated region
      $region154: #{byol_forward.2} parent=5 // pred_check
        %p813 = pneg %p812
      $region155: #{byol_forward.2} parent=5 // pred_check_branch
        %815 = sbr.rel (%p813) target = $region157
      $region156: #{byol_forward.2} parent=5 // pred_region
        %s816 = ssub.s32 %s11, 2
        // Predicated region
        $region158: #{byol_forward.2} parent=156 // pred_check
          %p817 = pneg %p195
        $region159: #{byol_forward.2} parent=156 // pred_check_branch
          %819 = sbr.rel (%p817) target = $region161
        $region160: #{byol_forward.2} parent=156 // pred_region
          %s820 = sand.u32 %s180, 1
          %s821 = sand.u32 %s180, 1
          %s822 = smul.addr %s821, 8
          %s823 = scalar_lea.vmem [#allocation5], %s822
        $region161: #{byol_forward.2} parent=156 // pred_fallthru
          _
      $region157: #{byol_forward.2} parent=5 // pred_fallthru
        _
    $region6: #{byol_forward.2} parent=1 // loop_footer
      %s15 = sadd.s32 1, %s11
    $region7: #{byol_forward.2} parent=1 // loop_footer_branch
      %10 = sbr.rel target = $region3
    $region8: #{byol_forward.2} parent=1 // loop_exit
      _

// kernel: byol_forward.3
$region0: #{byol_forward.3}
  #allocation0 [shape = 'u32[]', space=smem, size = 0x4, offset = 0x4, fixed_abs, tag = 'smem constant byte address 0x4 - core index']
  #allocation1 [shape = 'u32[144,128]{1,0:T(1,128)}', space=vmem, size = 0x12000, scoped, tag = 'internal scratch']
  %s0 = inlined_call_operand.vmem [shape: bf16[32,256], index: 0, kind: input, shape index: {}]
  %s1 = inlined_call_operand.vmem [shape: bf16[128,256], index: 1, kind: input, shape index: {}]
  %s2 = inlined_call_operand.vmem [shape: f32[1,256], index: 2, kind: input, shape index: {}]
  %s3 = inlined_call_operand.vmem [shape: f32[1,256], index: 3, kind: input, shape index: {}]
  %s4 = inlined_call_operand.vmem [shape: f32[1,256], index: 4, kind: input, shape index: {}]
  %s5 = inlined_call_operand.vmem [shape: bf16[256,128], index: 5, kind: input, shape index: {}]
  %s6 = inlined_call_operand.vmem [shape: f32[1,128], index: 6, kind: input, shape index: {}]
  %s7 = inlined_call_operand.vmem [shape: bf16[128,256], index: 7, kind: input, shape index: {}]
  %s8 = inlined_call_operand.vmem [shape: f32[1,256], index: 8, kind: input, shape index: {}]
  %s9 = inlined_call_operand.vmem [shape: f32[1,256], index: 9, kind: input, shape index: {}]
  %s10 = inlined_call_operand.vmem [shape: f32[1,256], index: 10, kind: input, shape index: {}]
  %s11 = inlined_call_operand.vmem [shape: bf16[256,128], index: 11, kind: input, shape index: {}]
  %s12 = inlined_call_operand.vmem [shape: f32[1,128], index: 12, kind: input, shape index: {}]
  %s13 = inlined_call_operand.vmem [shape: bf16[128,256], index: 13, kind: input, shape index: {}]
  %s14 = inlined_call_operand.vmem [shape: f32[1,256], index: 14, kind: input, shape index: {}]
  %s15 = inlined_call_operand.vmem [shape: f32[1,256], index: 15, kind: input, shape index: {}]
  %s16 = inlined_call_operand.vmem [shape: f32[1,256], index: 16, kind: input, shape index: {}]
  %s17 = inlined_call_operand.vmem [shape: bf16[256,128], index: 17, kind: input, shape index: {}]
  %s18 = inlined_call_operand.vmem [shape: f32[1,128], index: 18, kind: input, shape index: {}]
  %s19 = inlined_call_operand.hbm [shape: f32[1,1], index: 19, kind: output, shape index: {}]
  %s20 = sld [smem:[#allocation0]]
  $region86: #{byol_forward.3} parent=0
    _
  %s22 = ssub.s32 1, %s20
  %s23 = scalar_select 0, %s22, %s20
  $region1: #{byol_forward.3} parent=0
    #allocation2 [shape = 'u8[512]{0}', space=vmem, size = 0x400, scoped, tag = 'output window, operand 0, single buffered']
    #allocation3 [shape = 's32[1]{0}', space=sflag, size = 0x4, scoped, tag = 'scoped memory for byol_forward.3']
    %24 = vsyncpa [#allocation3], 0
    // Predicated region
    $region2: #{byol_forward.3} parent=1 // pred_check
      _
    $region3: #{byol_forward.3} parent=1 // pred_check_branch
      %26 = sbr.rel (0) target = $region5
    $region4: #{byol_forward.3} parent=1 // pred_region
      _
    $region5: #{byol_forward.3} parent=1 // pred_fallthru
      _
    // Predicated region
    $region6: #{byol_forward.3} parent=1 // pred_check
      _
    $region7: #{byol_forward.3} parent=1 // pred_check_branch
      %28 = sbr.rel (0) target = $region9
    $region8: #{byol_forward.3} parent=1 // pred_region
      _
    $region9: #{byol_forward.3} parent=1 // pred_fallthru
      _
    // Predicated region
    $region10: #{byol_forward.3} parent=1 // pred_check
      _
    $region11: #{byol_forward.3} parent=1 // pred_check_branch
      %30 = sbr.rel (0) target = $region13
    $region12: #{byol_forward.3} parent=1 // pred_region
      _
    $region13: #{byol_forward.3} parent=1 // pred_fallthru
      _
    // Predicated region
    $region14: #{byol_forward.3} parent=1 // pred_check
      _
    $region15: #{byol_forward.3} parent=1 // pred_check_branch
      %32 = sbr.rel (0) target = $region17
    $region16: #{byol_forward.3} parent=1 // pred_region
      _
    $region17: #{byol_forward.3} parent=1 // pred_fallthru
      _
    // Predicated region
    $region18: #{byol_forward.3} parent=1 // pred_check
      _
    $region19: #{byol_forward.3} parent=1 // pred_check_branch
      %34 = sbr.rel (0) target = $region21
    $region20: #{byol_forward.3} parent=1 // pred_region
      _
    $region21: #{byol_forward.3} parent=1 // pred_fallthru
      _
    // Predicated region
    $region22: #{byol_forward.3} parent=1 // pred_check
      _
    $region23: #{byol_forward.3} parent=1 // pred_check_branch
      %36 = sbr.rel (0) target = $region25
    $region24: #{byol_forward.3} parent=1 // pred_region
      _
    $region25: #{byol_forward.3} parent=1 // pred_fallthru
      _
    // Predicated region
    $region26: #{byol_forward.3} parent=1 // pred_check
      _
    $region27: #{byol_forward.3} parent=1 // pred_check_branch
      %38 = sbr.rel (0) target = $region29
    $region28: #{byol_forward.3} parent=1 // pred_region
      _
    $region29: #{byol_forward.3} parent=1 // pred_fallthru
      _
    // Predicated region
    $region30: #{byol_forward.3} parent=1 // pred_check
      _
    $region31: #{byol_forward.3} parent=1 // pred_check_branch
      %40 = sbr.rel (0) target = $region33
    $region32: #{byol_forward.3} parent=1 // pred_region
      _
    $region33: #{byol_forward.3} parent=1 // pred_fallthru
      _
    // Predicated region
    $region34: #{byol_forward.3} parent=1 // pred_check
      _
    $region35: #{byol_forward.3} parent=1 // pred_check_branch
      %42 = sbr.rel (0) target = $region37
    $region36: #{byol_forward.3} parent=1 // pred_region
      _
    $region37: #{byol_forward.3} parent=1 // pred_fallthru
      _
    // Predicated region
    $region38: #{byol_forward.3} parent=1 // pred_check
      _
    $region39: #{byol_forward.3} parent=1 // pred_check_branch
      %44 = sbr.rel (0) target = $region41
    $region40: #{byol_forward.3} parent=1 // pred_region
      _
    $region41: #{byol_forward.3} parent=1 // pred_fallthru
      _
    // Predicated region
    $region42: #{byol_forward.3} parent=1 // pred_check
      _
    $region43: #{byol_forward.3} parent=1 // pred_check_branch
      %46 = sbr.rel (0) target = $region45
    $region44: #{byol_forward.3} parent=1 // pred_region
      _
    $region45: #{byol_forward.3} parent=1 // pred_fallthru
      _
    // Predicated region
    $region46: #{byol_forward.3} parent=1 // pred_check
      _
    $region47: #{byol_forward.3} parent=1 // pred_check_branch
      %48 = sbr.rel (0) target = $region49
    $region48: #{byol_forward.3} parent=1 // pred_region
      _
    $region49: #{byol_forward.3} parent=1 // pred_fallthru
      _
    // Predicated region
    $region50: #{byol_forward.3} parent=1 // pred_check
      _
    $region51: #{byol_forward.3} parent=1 // pred_check_branch
      %50 = sbr.rel (0) target = $region53
    $region52: #{byol_forward.3} parent=1 // pred_region
      _
    $region53: #{byol_forward.3} parent=1 // pred_fallthru
      _
    // Predicated region
    $region54: #{byol_forward.3} parent=1 // pred_check
      _
    $region55: #{byol_forward.3} parent=1 // pred_check_branch
      %52 = sbr.rel (0) target = $region57
    $region56: #{byol_forward.3} parent=1 // pred_region
      _
    $region57: #{byol_forward.3} parent=1 // pred_fallthru
      _
    // Predicated region
    $region58: #{byol_forward.3} parent=1 // pred_check
      _
    $region59: #{byol_forward.3} parent=1 // pred_check_branch
      %54 = sbr.rel (0) target = $region61
    $region60: #{byol_forward.3} parent=1 // pred_region
      _
    $region61: #{byol_forward.3} parent=1 // pred_fallthru
      _
    // Predicated region
    $region62: #{byol_forward.3} parent=1 // pred_check
      _
    $region63: #{byol_forward.3} parent=1 // pred_check_branch
      %56 = sbr.rel (0) target = $region65
    $region64: #{byol_forward.3} parent=1 // pred_region
      _
    $region65: #{byol_forward.3} parent=1 // pred_fallthru
      _
    // Predicated region
    $region66: #{byol_forward.3} parent=1 // pred_check
      _
    $region67: #{byol_forward.3} parent=1 // pred_check_branch
      %58 = sbr.rel (0) target = $region69
    $region68: #{byol_forward.3} parent=1 // pred_region
      _
    $region69: #{byol_forward.3} parent=1 // pred_fallthru
      _
    // Predicated region
    $region70: #{byol_forward.3} parent=1 // pred_check
      _
    $region71: #{byol_forward.3} parent=1 // pred_check_branch
      %60 = sbr.rel (0) target = $region73
    $region72: #{byol_forward.3} parent=1 // pred_region
      _
    $region73: #{byol_forward.3} parent=1 // pred_fallthru
      _
    // Predicated region
    $region74: #{byol_forward.3} parent=1 // pred_check
      _
    $region75: #{byol_forward.3} parent=1 // pred_check_branch
      %62 = sbr.rel (0) target = $region77
    $region76: #{byol_forward.3} parent=1 // pred_region
      _
    $region77: #{byol_forward.3} parent=1 // pred_fallthru
      _
    %v64 = vld [vmem:[%s0] sm:$0xff]
    %v65 = vld [vmem:[%s0 + $0x8] sm:$0xff]
    %v66 = vld [vmem:[%s0 + $0x10] sm:$0xff]
    %v67 = vld [vmem:[%s0 + $0x18] sm:$0xff]
    %v68 = vld [vmem:[%s1] sm:$0xff]
    %v69 = vld [vmem:[%s1 + $0x8] sm:$0xff]
    %v70 = vld [vmem:[%s1 + $0x10] sm:$0xff]
    %v71 = vld [vmem:[%s1 + $0x18] sm:$0xff]
    %v72 = vld [vmem:[%s1 + $0x20] sm:$0xff]
    %v73 = vld [vmem:[%s1 + $0x28] sm:$0xff]
    %v74 = vld [vmem:[%s1 + $0x30] sm:$0xff]
    %v75 = vld [vmem:[%s1 + $0x38] sm:$0xff]
    %v76 = vld [vmem:[%s1 + $0x40] sm:$0xff]
    %v77 = vld [vmem:[%s1 + $0x48] sm:$0xff]
    %v78 = vld [vmem:[%s1 + $0x50] sm:$0xff]
    %v79 = vld [vmem:[%s1 + $0x58] sm:$0xff]
    %v80 = vld [vmem:[%s1 + $0x60] sm:$0xff]
    %v81 = vld [vmem:[%s1 + $0x68] sm:$0xff]
    %v82 = vld [vmem:[%s1 + $0x70] sm:$0xff]
    %v83 = vld [vmem:[%s1 + $0x78] sm:$0xff]
    %v84 = vld [vmem:[%s2] sm:$0x3]
    %v86 = vlaneseq
    %v87 = vshrl.u32 %v86, 7
    %v88 = vsub.s32 0, %v87
    %v89 = vrot.slane %v84, %v88
    %v90 = vlaneseq
    %v91 = vshrl.u32 %v90, 7
    %v92 = vsub.s32 1, %v91
    %v93 = vrot.slane %v84, %v92
    %v100 = vunpack.c.l.b16 %v64
    %v101 = vunpack.c.l.b16 %v65
    %v102 = vunpack.c.l.b16 %v66
    %v103 = vunpack.c.l.b16 %v67
    %v104 = vpack.c.b16 %v101, %v100
    %v105 = vpack.c.b16 %v103, %v102
    %v124 = vunpack.c.l.b16 %v68
    %v125 = vunpack.c.h.b16 %v68
    %v126 = vunpack.c.l.b16 %v69
    %v127 = vunpack.c.h.b16 %v69
    %v128 = vunpack.c.l.b16 %v70
    %v129 = vunpack.c.h.b16 %v70
    %v130 = vunpack.c.l.b16 %v71
    %v131 = vunpack.c.h.b16 %v71
    %v132 = vunpack.c.l.b16 %v72
    %v133 = vunpack.c.h.b16 %v72
    %v134 = vunpack.c.l.b16 %v73
    %v135 = vunpack.c.h.b16 %v73
    %v136 = vunpack.c.l.b16 %v74
    %v137 = vunpack.c.h.b16 %v74
    %v138 = vunpack.c.l.b16 %v75
    %v139 = vunpack.c.h.b16 %v75
    %v140 = vunpack.c.l.b16 %v76
    %v141 = vunpack.c.h.b16 %v76
    %v142 = vunpack.c.l.b16 %v77
    %v143 = vunpack.c.h.b16 %v77
    %v144 = vunpack.c.l.b16 %v78
    %v145 = vunpack.c.h.b16 %v78
    %v146 = vunpack.c.l.b16 %v79
    %v147 = vunpack.c.h.b16 %v79
    %v148 = vunpack.c.l.b16 %v80
    %v149 = vunpack.c.h.b16 %v80
    %v150 = vunpack.c.l.b16 %v81
    %v151 = vunpack.c.h.b16 %v81
    %v152 = vunpack.c.l.b16 %v82
    %v153 = vunpack.c.h.b16 %v82
    %v154 = vunpack.c.l.b16 %v83
    %v155 = vunpack.c.h.b16 %v83
    %v156 = vpack.c.b16 %v126, %v124
    %v157 = vpack.c.b16 %v127, %v125
    %v158 = vpack.c.b16 %v130, %v128
    %v159 = vpack.c.b16 %v131, %v129
    %v160 = vpack.c.b16 %v134, %v132
    %v161 = vpack.c.b16 %v135, %v133
    %v162 = vpack.c.b16 %v138, %v136
    %v163 = vpack.c.b16 %v139, %v137
    %v164 = vpack.c.b16 %v142, %v140
    %v165 = vpack.c.b16 %v143, %v141
    %v166 = vpack.c.b16 %v146, %v144
    %v167 = vpack.c.b16 %v147, %v145
    %v168 = vpack.c.b16 %v150, %v148
    %v169 = vpack.c.b16 %v151, %v149
    %v170 = vpack.c.b16 %v154, %v152
    %v171 = vpack.c.b16 %v155, %v153
    %188 = vmatprep.subr.bf16.mxu0 %v171
    %189 = vmatpush1.bf16.msra.mxu0 %v170
    %190 = vmatprep.subr.bf16.mxu0 %v169
    %191 = vmatpush1.bf16.msra.mxu0 %v168
    %192 = vmatprep.subr.bf16.mxu0 %v167
    %193 = vmatpush1.bf16.msra.mxu0 %v166
    %194 = vmatprep.subr.bf16.mxu0 %v165
    %195 = vmatpush1.bf16.msra.mxu0 %v164
    %196 = vmatprep.subr.bf16.mxu0 %v163
    %197 = vmatpush1.bf16.msra.mxu0 %v162
    %198 = vmatprep.subr.bf16.mxu0 %v161
    %199 = vmatpush1.bf16.msra.mxu0 %v160
    %200 = vmatprep.subr.bf16.mxu0 %v159
    %201 = vmatpush1.bf16.msra.mxu0 %v158
    %202 = vmatprep.subr.bf16.mxu0 %v157
    %203 = vmatpush1.bf16.msra.mxu0 %v156
    %204 = vmatprep.subr.bf16.mxu0 0
    %205 = vmatpush2.bf16.msra.mxu0 0
    %206 = vmatprep.subr.bf16.mxu0 0
    %207 = vmatpush2.bf16.msra.mxu0 0
    %208 = vmatprep.subr.bf16.mxu0 0
    %209 = vmatpush2.bf16.msra.mxu0 0
    %210 = vmatprep.subr.bf16.mxu0 0
    %211 = vmatpush2.bf16.msra.mxu0 0
    %212 = vmatprep.subr.bf16.mxu0 0
    %213 = vmatpush2.bf16.msra.mxu0 0
    %214 = vmatprep.subr.bf16.mxu0 0
    %215 = vmatpush2.bf16.msra.mxu0 0
    %216 = vmatprep.subr.bf16.mxu0 0
    %217 = vmatpush2.bf16.msra.mxu0 0
    %218 = vmatprep.subr.bf16.mxu0 0
    %219 = vmatpush2.bf16.msra.mxu0 0
    %220 = vmatprep.mubr.bf16.mxu0 0
    %221 = vmatmul.mubr.bf16.gmra.mxu0 %v104
    %v222 = vpop.f32.mrf.mxu0
    %v223 = vadd.f32 %v89, %v222
    %v224 = vpop.f32.mrf.mxu0
    %v225 = vadd.f32 %v93, %v224
    %v226 = vpop.f32.mrf.mxu0
    %v227 = vadd.f32 %v89, %v226
    %v228 = vpop.f32.mrf.mxu0
    %v229 = vadd.f32 %v93, %v228
    %230 = vmatprep.mubr.bf16.mxu0 0
    %231 = vmatmul.mubr.bf16.gmra.mxu0 %v105
    %v232 = vpop.f32.mrf.mxu0
    %v233 = vadd.f32 %v89, %v232
    %v234 = vpop.f32.mrf.mxu0
    %v235 = vadd.f32 %v93, %v234
    %v236 = vpop.f32.mrf.mxu0
    %v237 = vadd.f32 %v89, %v236
    %v238 = vpop.f32.mrf.mxu0
    %v239 = vadd.f32 %v93, %v238
    %240 = vdwg.mxu0
    %v241 = vadd.f32 %v223, %v227
    %v242 = vrot.slane %v241, 4
    %v243 = vadd.f32 %v241, %v242
    %v244 = vrot.slane %v243, 2
    %v245 = vadd.f32 %v243, %v244
    %v246 = vrot.slane %v245, 1
    %v247 = vadd.f32 %v245, %v246
    %v248 = vadd.f32 %v225, %v229
    %v249 = vrot.slane %v248, 4
    %v250 = vadd.f32 %v248, %v249
    %v251 = vrot.slane %v250, 2
    %v252 = vadd.f32 %v250, %v251
    %v253 = vrot.slane %v252, 1
    %v254 = vadd.f32 %v252, %v253
    %v255 = vadd.f32 %v233, %v237
    %v256 = vrot.slane %v255, 4
    %v257 = vadd.f32 %v255, %v256
    %v258 = vrot.slane %v257, 2
    %v259 = vadd.f32 %v257, %v258
    %v260 = vrot.slane %v259, 1
    %v261 = vadd.f32 %v259, %v260
    %v262 = vadd.f32 %v235, %v239
    %v263 = vrot.slane %v262, 4
    %v264 = vadd.f32 %v262, %v263
    %v265 = vrot.slane %v264, 2
    %v266 = vadd.f32 %v264, %v265
    %v267 = vrot.slane %v266, 1
    %v268 = vadd.f32 %v266, %v267
    %v269 = vrcp.pop 16.0
    %v270 = vmul.f32 %v247, %v269
    %v271 = vmul.f32 %v254, %v269
    %v272 = vmul.f32 %v261, %v269
    %v273 = vmul.f32 %v268, %v269
    %v274 = vsub.f32 %v223, %v270
    %v275 = vsub.f32 %v225, %v271
    %v276 = vsub.f32 %v227, %v270
    %v277 = vsub.f32 %v229, %v271
    %v278 = vsub.f32 %v233, %v272
    %v279 = vsub.f32 %v235, %v273
    %v280 = vsub.f32 %v237, %v272
    %v281 = vsub.f32 %v239, %v273
    %v282 = vmul.f32 %v274, %v274
    %v283 = vmul.f32 %v275, %v275
    %v284 = vmul.f32 %v276, %v276
    %v285 = vmul.f32 %v277, %v277
    %v286 = vmul.f32 %v278, %v278
    %v287 = vmul.f32 %v279, %v279
    %v288 = vmul.f32 %v280, %v280
    %v289 = vmul.f32 %v281, %v281
    %v290 = vadd.f32 %v282, %v284
    %v291 = vrot.slane %v290, 4
    %v292 = vadd.f32 %v290, %v291
    %v293 = vrot.slane %v292, 2
    %v294 = vadd.f32 %v292, %v293
    %v295 = vrot.slane %v294, 1
    %v296 = vadd.f32 %v294, %v295
    %v297 = vadd.f32 %v283, %v285
    %v298 = vrot.slane %v297, 4
    %v299 = vadd.f32 %v297, %v298
    %v300 = vrot.slane %v299, 2
    %v301 = vadd.f32 %v299, %v300
    %v302 = vrot.slane %v301, 1
    %v303 = vadd.f32 %v301, %v302
    %v304 = vadd.f32 %v286, %v288
    %v305 = vrot.slane %v304, 4
    %v306 = vadd.f32 %v304, %v305
    %v307 = vrot.slane %v306, 2
    %v308 = vadd.f32 %v306, %v307
    %v309 = vrot.slane %v308, 1
    %v310 = vadd.f32 %v308, %v309
    %v311 = vadd.f32 %v287, %v289
    %v312 = vrot.slane %v311, 4
    %v313 = vadd.f32 %v311, %v312
    %v314 = vrot.slane %v313, 2
    %v315 = vadd.f32 %v313, %v314
    %v316 = vrot.slane %v315, 1
    %v317 = vadd.f32 %v315, %v316
    %v318 = vmul.f32 %v296, %v269
    %v319 = vmul.f32 %v303, %v269
    %v320 = vmul.f32 %v310, %v269
    %v321 = vmul.f32 %v317, %v269
    %v322 = vadd.f32 %v318, 1e-05
    %v323 = vadd.f32 %v319, 1e-05
    %v324 = vadd.f32 %v320, 1e-05
    %v325 = vadd.f32 %v321, 1e-05
    %v326 = vrsqrt.pop %v322
    %v327 = vrsqrt.pop %v323
    %v328 = vrsqrt.pop %v324
    %v329 = vrsqrt.pop %v325
    %v330 = vmul.f32 %v274, %v326
    %v331 = vmul.f32 %v275, %v327
    %v332 = vmul.f32 %v276, %v326
    %v333 = vmul.f32 %v277, %v327
    %v334 = vmul.f32 %v278, %v328
    %v335 = vmul.f32 %v279, %v329
    %v336 = vmul.f32 %v280, %v328
    %v337 = vmul.f32 %v281, %v329
    %v338 = vld [vmem:[%s3] sm:$0x3]
    %v340 = vlaneseq
    %v341 = vshrl.u32 %v340, 7
    %v342 = vsub.s32 0, %v341
    %v343 = vrot.slane %v338, %v342
    %v344 = vlaneseq
    %v345 = vshrl.u32 %v344, 7
    %v346 = vsub.s32 1, %v345
    %v347 = vrot.slane %v338, %v346
    %v350 = vmul.f32 %v330, %v343
    %v351 = vmul.f32 %v331, %v347
    %v352 = vmul.f32 %v332, %v343
    %v353 = vmul.f32 %v333, %v347
    %v354 = vmul.f32 %v334, %v343
    %v355 = vmul.f32 %v335, %v347
    %v356 = vmul.f32 %v336, %v343
    %v357 = vmul.f32 %v337, %v347
    %v358 = vld [vmem:[%s4] sm:$0x3]
    %v360 = vlaneseq
    %v361 = vshrl.u32 %v360, 7
    %v362 = vsub.s32 0, %v361
    %v363 = vrot.slane %v358, %v362
    %v364 = vlaneseq
    %v365 = vshrl.u32 %v364, 7
    %v366 = vsub.s32 1, %v365
    %v367 = vrot.slane %v358, %v366
    %v370 = vadd.f32 %v350, %v363
    %v371 = vadd.f32 %v351, %v367
    %v372 = vadd.f32 %v352, %v363
    %v373 = vadd.f32 %v353, %v367
    %v374 = vadd.f32 %v354, %v363
    %v375 = vadd.f32 %v355, %v367
    %v376 = vadd.f32 %v356, %v363
    %v377 = vadd.f32 %v357, %v367
    %v378 = vmax.f32 %v370, 0.0
    %v379 = vmax.f32 %v371, 0.0
    %v380 = vmax.f32 %v372, 0.0
    %v381 = vmax.f32 %v373, 0.0
    %v382 = vmax.f32 %v374, 0.0
    %v383 = vmax.f32 %v375, 0.0
    %v384 = vmax.f32 %v376, 0.0
    %v385 = vmax.f32 %v377, 0.0
    %v386 = vpack.c.bf16 %v380, %v378
    %v387 = vpack.c.bf16 %v381, %v379
    %v388 = vpack.c.bf16 %v384, %v382
    %v389 = vpack.c.bf16 %v385, %v383
    %v390 = vld [vmem:[%s5] sm:$0xf]
    %v391 = vld [vmem:[%s5 + $0x4] sm:$0xf]
    %v392 = vld [vmem:[%s5 + $0x8] sm:$0xf]
    %v393 = vld [vmem:[%s5 + $0xc] sm:$0xf]
    %v394 = vld [vmem:[%s5 + $0x10] sm:$0xf]
    %v395 = vld [vmem:[%s5 + $0x14] sm:$0xf]
    %v396 = vld [vmem:[%s5 + $0x18] sm:$0xf]
    %v397 = vld [vmem:[%s5 + $0x1c] sm:$0xf]
    %v398 = vld [vmem:[%s5 + $0x20] sm:$0xf]
    %v399 = vld [vmem:[%s5 + $0x24] sm:$0xf]
    %v400 = vld [vmem:[%s5 + $0x28] sm:$0xf]
    %v401 = vld [vmem:[%s5 + $0x2c] sm:$0xf]
    %v402 = vld [vmem:[%s5 + $0x30] sm:$0xf]
    %v403 = vld [vmem:[%s5 + $0x34] sm:$0xf]
    %v404 = vld [vmem:[%s5 + $0x38] sm:$0xf]
    %v405 = vld [vmem:[%s5 + $0x3c] sm:$0xf]
    %v406 = vld [vmem:[%s5 + $0x40] sm:$0xf]
    %v407 = vld [vmem:[%s5 + $0x44] sm:$0xf]
    %v408 = vld [vmem:[%s5 + $0x48] sm:$0xf]
    %v409 = vld [vmem:[%s5 + $0x4c] sm:$0xf]
    %v410 = vld [vmem:[%s5 + $0x50] sm:$0xf]
    %v411 = vld [vmem:[%s5 + $0x54] sm:$0xf]
    %v412 = vld [vmem:[%s5 + $0x58] sm:$0xf]
    %v413 = vld [vmem:[%s5 + $0x5c] sm:$0xf]
    %v414 = vld [vmem:[%s5 + $0x60] sm:$0xf]
    %v415 = vld [vmem:[%s5 + $0x64] sm:$0xf]
    %v416 = vld [vmem:[%s5 + $0x68] sm:$0xf]
    %v417 = vld [vmem:[%s5 + $0x6c] sm:$0xf]
    %v418 = vld [vmem:[%s5 + $0x70] sm:$0xf]
    %v419 = vld [vmem:[%s5 + $0x74] sm:$0xf]
    %v420 = vld [vmem:[%s5 + $0x78] sm:$0xf]
    %v421 = vld [vmem:[%s5 + $0x7c] sm:$0xf]
    %v422 = vld [vmem:[%s6] sm:$0x1]
    %v424 = vlaneseq
    %v425 = vshrl.u32 %v424, 7
    %v426 = vsub.s32 0, %v425
    %v427 = vrot.slane %v422, %v426
    %v461 = vunpack.c.l.b16 %v390
    %v462 = vunpack.c.l.b16 %v391
    %v463 = vunpack.c.l.b16 %v392
    %v464 = vunpack.c.l.b16 %v393
    %v465 = vunpack.c.l.b16 %v394
    %v466 = vunpack.c.l.b16 %v395
    %v467 = vunpack.c.l.b16 %v396
    %v468 = vunpack.c.l.b16 %v397
    %v469 = vunpack.c.l.b16 %v398
    %v470 = vunpack.c.l.b16 %v399
    %v471 = vunpack.c.l.b16 %v400
    %v472 = vunpack.c.l.b16 %v401
    %v473 = vunpack.c.l.b16 %v402
    %v474 = vunpack.c.l.b16 %v403
    %v475 = vunpack.c.l.b16 %v404
    %v476 = vunpack.c.l.b16 %v405
    %v477 = vunpack.c.l.b16 %v406
    %v478 = vunpack.c.l.b16 %v407
    %v479 = vunpack.c.l.b16 %v408
    %v480 = vunpack.c.l.b16 %v409
    %v481 = vunpack.c.l.b16 %v410
    %v482 = vunpack.c.l.b16 %v411
    %v483 = vunpack.c.l.b16 %v412
    %v484 = vunpack.c.l.b16 %v413
    %v485 = vunpack.c.l.b16 %v414
    %v486 = vunpack.c.l.b16 %v415
    %v487 = vunpack.c.l.b16 %v416
    %v488 = vunpack.c.l.b16 %v417
    %v489 = vunpack.c.l.b16 %v418
    %v490 = vunpack.c.l.b16 %v419
    %v491 = vunpack.c.l.b16 %v420
    %v492 = vunpack.c.l.b16 %v421
    %v493 = vpack.c.b16 %v462, %v461
    %v494 = vpack.c.b16 %v464, %v463
    %v495 = vpack.c.b16 %v466, %v465
    %v496 = vpack.c.b16 %v468, %v467
    %v497 = vpack.c.b16 %v470, %v469
    %v498 = vpack.c.b16 %v472, %v471
    %v499 = vpack.c.b16 %v474, %v473
    %v500 = vpack.c.b16 %v476, %v475
    %v501 = vpack.c.b16 %v478, %v477
    %v502 = vpack.c.b16 %v480, %v479
    %v503 = vpack.c.b16 %v482, %v481
    %v504 = vpack.c.b16 %v484, %v483
    %v505 = vpack.c.b16 %v486, %v485
    %v506 = vpack.c.b16 %v488, %v487
    %v507 = vpack.c.b16 %v490, %v489
    %v508 = vpack.c.b16 %v492, %v491
    %525 = vmatprep.subr.bf16.mxu0 0
    %526 = vmatpush1.bf16.msra.mxu0 %v500
    %527 = vmatprep.subr.bf16.mxu0 0
    %528 = vmatpush1.bf16.msra.mxu0 %v499
    %529 = vmatprep.subr.bf16.mxu0 0
    %530 = vmatpush1.bf16.msra.mxu0 %v498
    %531 = vmatprep.subr.bf16.mxu0 0
    %532 = vmatpush1.bf16.msra.mxu0 %v497
    %533 = vmatprep.subr.bf16.mxu0 0
    %534 = vmatpush1.bf16.msra.mxu0 %v496
    %535 = vmatprep.subr.bf16.mxu0 0
    %536 = vmatpush1.bf16.msra.mxu0 %v495
    %537 = vmatprep.subr.bf16.mxu0 0
    %538 = vmatpush1.bf16.msra.mxu0 %v494
    %539 = vmatprep.subr.bf16.mxu0 0
    %540 = vmatpush1.bf16.msra.mxu0 %v493
    %541 = vmatprep.subr.bf16.mxu0 0
    %542 = vmatpush2.bf16.msra.mxu0 %v508
    %543 = vmatprep.subr.bf16.mxu0 0
    %544 = vmatpush2.bf16.msra.mxu0 %v507
    %545 = vmatprep.subr.bf16.mxu0 0
    %546 = vmatpush2.bf16.msra.mxu0 %v506
    %547 = vmatprep.subr.bf16.mxu0 0
    %548 = vmatpush2.bf16.msra.mxu0 %v505
    %549 = vmatprep.subr.bf16.mxu0 0
    %550 = vmatpush2.bf16.msra.mxu0 %v504
    %551 = vmatprep.subr.bf16.mxu0 0
    %552 = vmatpush2.bf16.msra.mxu0 %v503
    %553 = vmatprep.subr.bf16.mxu0 0
    %554 = vmatpush2.bf16.msra.mxu0 %v502
    %555 = vmatprep.subr.bf16.mxu0 0
    %556 = vmatpush2.bf16.msra.mxu0 %v501
    %557 = vmatprep.mubr.bf16.mxu0 %v387
    %558 = vmatmul.mubr.bf16.gmra.mxu0 %v386
    %v559 = vpop.f32.mrf.mxu0
    %v560 = vadd.f32 %v427, %v559
    %v561 = vpop.f32.mrf.mxu0
    %v562 = vpop.f32.mrf.mxu0
    %v563 = vadd.f32 %v427, %v562
    %v564 = vpop.f32.mrf.mxu0
    %565 = vmatprep.mubr.bf16.mxu0 %v389
    %566 = vmatmul.mubr.bf16.gmra.mxu0 %v388
    %v567 = vpop.f32.mrf.mxu0
    %v568 = vadd.f32 %v427, %v567
    %v569 = vpop.f32.mrf.mxu0
    %v570 = vpop.f32.mrf.mxu0
    %v571 = vadd.f32 %v427, %v570
    %v572 = vpop.f32.mrf.mxu0
    %573 = vdwg.mxu0
    %v574 = vpack.c.bf16 %v563, %v560
    %v575 = vpack.c.bf16 %v571, %v568
    %v576 = vld [vmem:[%s7] sm:$0xff]
    %v577 = vld [vmem:[%s7 + $0x8] sm:$0xff]
    %v578 = vld [vmem:[%s7 + $0x10] sm:$0xff]
    %v579 = vld [vmem:[%s7 + $0x18] sm:$0xff]
    %v580 = vld [vmem:[%s7 + $0x20] sm:$0xff]
    %v581 = vld [vmem:[%s7 + $0x28] sm:$0xff]
    %v582 = vld [vmem:[%s7 + $0x30] sm:$0xff]
    %v583 = vld [vmem:[%s7 + $0x38] sm:$0xff]
    %v584 = vld [vmem:[%s7 + $0x40] sm:$0xff]
    %v585 = vld [vmem:[%s7 + $0x48] sm:$0xff]
    %v586 = vld [vmem:[%s7 + $0x50] sm:$0xff]
    %v587 = vld [vmem:[%s7 + $0x58] sm:$0xff]
    %v588 = vld [vmem:[%s7 + $0x60] sm:$0xff]
    %v589 = vld [vmem:[%s7 + $0x68] sm:$0xff]
    %v590 = vld [vmem:[%s7 + $0x70] sm:$0xff]
    %v591 = vld [vmem:[%s7 + $0x78] sm:$0xff]
    %v592 = vld [vmem:[%s8] sm:$0x3]
    %v594 = vlaneseq
    %v595 = vshrl.u32 %v594, 7
    %v596 = vsub.s32 0, %v595
    %v597 = vrot.slane %v592, %v596
    %v598 = vlaneseq
    %v599 = vshrl.u32 %v598, 7
    %v600 = vsub.s32 1, %v599
    %v601 = vrot.slane %v592, %v600
    %v620 = vunpack.c.l.b16 %v576
    %v621 = vunpack.c.h.b16 %v576
    %v622 = vunpack.c.l.b16 %v577
    %v623 = vunpack.c.h.b16 %v577
    %v624 = vunpack.c.l.b16 %v578
    %v625 = vunpack.c.h.b16 %v578
    %v626 = vunpack.c.l.b16 %v579
    %v627 = vunpack.c.h.b16 %v579
    %v628 = vunpack.c.l.b16 %v580
    %v629 = vunpack.c.h.b16 %v580
    %v630 = vunpack.c.l.b16 %v581
    %v631 = vunpack.c.h.b16 %v581
    %v632 = vunpack.c.l.b16 %v582
    %v633 = vunpack.c.h.b16 %v582
    %v634 = vunpack.c.l.b16 %v583
    %v635 = vunpack.c.h.b16 %v583
    %v636 = vunpack.c.l.b16 %v584
    %v637 = vunpack.c.h.b16 %v584
    %v638 = vunpack.c.l.b16 %v585
    %v639 = vunpack.c.h.b16 %v585
    %v640 = vunpack.c.l.b16 %v586
    %v641 = vunpack.c.h.b16 %v586
    %v642 = vunpack.c.l.b16 %v587
    %v643 = vunpack.c.h.b16 %v587
    %v644 = vunpack.c.l.b16 %v588
    %v645 = vunpack.c.h.b16 %v588
    %v646 = vunpack.c.l.b16 %v589
    %v647 = vunpack.c.h.b16 %v589
    %v648 = vunpack.c.l.b16 %v590
    %v649 = vunpack.c.h.b16 %v590
    %v650 = vunpack.c.l.b16 %v591
    %v651 = vunpack.c.h.b16 %v591
    %v652 = vpack.c.b16 %v622, %v620
    %v653 = vpack.c.b16 %v623, %v621
    %v654 = vpack.c.b16 %v626, %v624
    %v655 = vpack.c.b16 %v627, %v625
    %v656 = vpack.c.b16 %v630, %v628
    %v657 = vpack.c.b16 %v631, %v629
    %v658 = vpack.c.b16 %v634, %v632
    %v659 = vpack.c.b16 %v635, %v633
    %v660 = vpack.c.b16 %v638, %v636
    %v661 = vpack.c.b16 %v639, %v637
    %v662 = vpack.c.b16 %v642, %v640
    %v663 = vpack.c.b16 %v643, %v641
    %v664 = vpack.c.b16 %v646, %v644
    %v665 = vpack.c.b16 %v647, %v645
    %v666 = vpack.c.b16 %v650, %v648
    %v667 = vpack.c.b16 %v651, %v649
    %684 = vmatprep.subr.bf16.mxu0 %v667
    %685 = vmatpush1.bf16.msra.mxu0 %v666
    %686 = vmatprep.subr.bf16.mxu0 %v665
    %687 = vmatpush1.bf16.msra.mxu0 %v664
    %688 = vmatprep.subr.bf16.mxu0 %v663
    %689 = vmatpush1.bf16.msra.mxu0 %v662
    %690 = vmatprep.subr.bf16.mxu0 %v661
    %691 = vmatpush1.bf16.msra.mxu0 %v660
    %692 = vmatprep.subr.bf16.mxu0 %v659
    %693 = vmatpush1.bf16.msra.mxu0 %v658
    %694 = vmatprep.subr.bf16.mxu0 %v657
    %695 = vmatpush1.bf16.msra.mxu0 %v656
    %696 = vmatprep.subr.bf16.mxu0 %v655
    %697 = vmatpush1.bf16.msra.mxu0 %v654
    %698 = vmatprep.subr.bf16.mxu0 %v653
    %699 = vmatpush1.bf16.msra.mxu0 %v652
    %700 = vmatprep.subr.bf16.mxu0 0
    %701 = vmatpush2.bf16.msra.mxu0 0
    %702 = vmatprep.subr.bf16.mxu0 0
    %703 = vmatpush2.bf16.msra.mxu0 0
    %704 = vmatprep.subr.bf16.mxu0 0
    %705 = vmatpush2.bf16.msra.mxu0 0
    %706 = vmatprep.subr.bf16.mxu0 0
    %707 = vmatpush2.bf16.msra.mxu0 0
    %708 = vmatprep.subr.bf16.mxu0 0
    %709 = vmatpush2.bf16.msra.mxu0 0
    %710 = vmatprep.subr.bf16.mxu0 0
    %711 = vmatpush2.bf16.msra.mxu0 0
    %712 = vmatprep.subr.bf16.mxu0 0
    %713 = vmatpush2.bf16.msra.mxu0 0
    %714 = vmatprep.subr.bf16.mxu0 0
    %715 = vmatpush2.bf16.msra.mxu0 0
    %716 = vmatprep.mubr.bf16.mxu0 0
    %717 = vmatmul.mubr.bf16.gmra.mxu0 %v574
    %v718 = vpop.f32.mrf.mxu0
    %v719 = vadd.f32 %v597, %v718
    %v720 = vpop.f32.mrf.mxu0
    %v721 = vadd.f32 %v601, %v720
    %v722 = vpop.f32.mrf.mxu0
    %v723 = vadd.f32 %v597, %v722
    %v724 = vpop.f32.mrf.mxu0
    %v725 = vadd.f32 %v601, %v724
    %726 = vmatprep.mubr.bf16.mxu0 0
    %727 = vmatmul.mubr.bf16.gmra.mxu0 %v575
    %v728 = vpop.f32.mrf.mxu0
    %v729 = vadd.f32 %v597, %v728
    %v730 = vpop.f32.mrf.mxu0
    %v731 = vadd.f32 %v601, %v730
    %v732 = vpop.f32.mrf.mxu0
    %v733 = vadd.f32 %v597, %v732
    %v734 = vpop.f32.mrf.mxu0
    %v735 = vadd.f32 %v601, %v734
    %736 = vdwg.mxu0
    %v737 = vadd.f32 %v719, %v723
    %v738 = vrot.slane %v737, 4
    %v739 = vadd.f32 %v737, %v738
    %v740 = vrot.slane %v739, 2
    %v741 = vadd.f32 %v739, %v740
    %v742 = vrot.slane %v741, 1
    %v743 = vadd.f32 %v741, %v742
    %v744 = vadd.f32 %v721, %v725
    %v745 = vrot.slane %v744, 4
    %v746 = vadd.f32 %v744, %v745
    %v747 = vrot.slane %v746, 2
    %v748 = vadd.f32 %v746, %v747
    %v749 = vrot.slane %v748, 1
    %v750 = vadd.f32 %v748, %v749
    %v751 = vadd.f32 %v729, %v733
    %v752 = vrot.slane %v751, 4
    %v753 = vadd.f32 %v751, %v752
    %v754 = vrot.slane %v753, 2
    %v755 = vadd.f32 %v753, %v754
    %v756 = vrot.slane %v755, 1
    %v757 = vadd.f32 %v755, %v756
    %v758 = vadd.f32 %v731, %v735
    %v759 = vrot.slane %v758, 4
    %v760 = vadd.f32 %v758, %v759
    %v761 = vrot.slane %v760, 2
    %v762 = vadd.f32 %v760, %v761
    %v763 = vrot.slane %v762, 1
    %v764 = vadd.f32 %v762, %v763
    %v765 = vmul.f32 %v743, %v269
    %v766 = vmul.f32 %v750, %v269
    %v767 = vmul.f32 %v757, %v269
    %v768 = vmul.f32 %v764, %v269
    %v769 = vsub.f32 %v719, %v765
    %v770 = vsub.f32 %v721, %v766
    %v771 = vsub.f32 %v723, %v765
    %v772 = vsub.f32 %v725, %v766
    %v773 = vsub.f32 %v729, %v767
    %v774 = vsub.f32 %v731, %v768
    %v775 = vsub.f32 %v733, %v767
    %v776 = vsub.f32 %v735, %v768
    %v777 = vmul.f32 %v769, %v769
    %v778 = vmul.f32 %v770, %v770
    %v779 = vmul.f32 %v771, %v771
    %v780 = vmul.f32 %v772, %v772
    %v781 = vmul.f32 %v773, %v773
    %v782 = vmul.f32 %v774, %v774
    %v783 = vmul.f32 %v775, %v775
    %v784 = vmul.f32 %v776, %v776
    %v785 = vadd.f32 %v777, %v779
    %v786 = vrot.slane %v785, 4
    %v787 = vadd.f32 %v785, %v786
    %v788 = vrot.slane %v787, 2
    %v789 = vadd.f32 %v787, %v788
    %v790 = vrot.slane %v789, 1
    %v791 = vadd.f32 %v789, %v790
    %v792 = vadd.f32 %v778, %v780
    %v793 = vrot.slane %v792, 4
    %v794 = vadd.f32 %v792, %v793
    %v795 = vrot.slane %v794, 2
    %v796 = vadd.f32 %v794, %v795
    %v797 = vrot.slane %v796, 1
    %v798 = vadd.f32 %v796, %v797
    %v799 = vadd.f32 %v781, %v783
    %v800 = vrot.slane %v799, 4
    %v801 = vadd.f32 %v799, %v800
    %v802 = vrot.slane %v801, 2
    %v803 = vadd.f32 %v801, %v802
    %v804 = vrot.slane %v803, 1
    %v805 = vadd.f32 %v803, %v804
    %v806 = vadd.f32 %v782, %v784
    %v807 = vrot.slane %v806, 4
    %v808 = vadd.f32 %v806, %v807
    %v809 = vrot.slane %v808, 2
    %v810 = vadd.f32 %v808, %v809
    %v811 = vrot.slane %v810, 1
    %v812 = vadd.f32 %v810, %v811
    %v813 = vmul.f32 %v791, %v269
    %v814 = vmul.f32 %v798, %v269
    %v815 = vmul.f32 %v805, %v269
    %v816 = vmul.f32 %v812, %v269
    %v817 = vadd.f32 %v813, 1e-05
    %v818 = vadd.f32 %v814, 1e-05
    %v819 = vadd.f32 %v815, 1e-05
    %v820 = vadd.f32 %v816, 1e-05
    %v821 = vrsqrt.pop %v817
    %v822 = vrsqrt.pop %v818
    %v823 = vrsqrt.pop %v819
    %v824 = vrsqrt.pop %v820
    %v825 = vmul.f32 %v769, %v821
    %v826 = vmul.f32 %v770, %v822
    %v827 = vmul.f32 %v771, %v821
    %v828 = vmul.f32 %v772, %v822
    %v829 = vmul.f32 %v773, %v823
    %v830 = vmul.f32 %v774, %v824
    %v831 = vmul.f32 %v775, %v823
    %v832 = vmul.f32 %v776, %v824
    %v833 = vld [vmem:[%s9] sm:$0x3]
    %v835 = vlaneseq
    %v836 = vshrl.u32 %v835, 7
    %v837 = vsub.s32 0, %v836
    %v838 = vrot.slane %v833, %v837
    %v839 = vlaneseq
    %v840 = vshrl.u32 %v839, 7
    %v841 = vsub.s32 1, %v840
    %v842 = vrot.slane %v833, %v841
    %v845 = vmul.f32 %v825, %v838
    %v846 = vmul.f32 %v826, %v842
    %v847 = vmul.f32 %v827, %v838
    %v848 = vmul.f32 %v828, %v842
    %v849 = vmul.f32 %v829, %v838
    %v850 = vmul.f32 %v830, %v842
    %v851 = vmul.f32 %v831, %v838
    %v852 = vmul.f32 %v832, %v842
    %v853 = vld [vmem:[%s10] sm:$0x3]
    %v855 = vlaneseq
    %v856 = vshrl.u32 %v855, 7
    %v857 = vsub.s32 0, %v856
    %v858 = vrot.slane %v853, %v857
    %v859 = vlaneseq
    %v860 = vshrl.u32 %v859, 7
    %v861 = vsub.s32 1, %v860
    %v862 = vrot.slane %v853, %v861
    %v865 = vadd.f32 %v845, %v858
    %v866 = vadd.f32 %v846, %v862
    %v867 = vadd.f32 %v847, %v858
    %v868 = vadd.f32 %v848, %v862
    %v869 = vadd.f32 %v849, %v858
    %v870 = vadd.f32 %v850, %v862
    %v871 = vadd.f32 %v851, %v858
    %v872 = vadd.f32 %v852, %v862
    %v873 = vmax.f32 %v865, 0.0
    %v874 = vmax.f32 %v866, 0.0
    %v875 = vmax.f32 %v867, 0.0
    %v876 = vmax.f32 %v868, 0.0
    %v877 = vmax.f32 %v869, 0.0
    %v878 = vmax.f32 %v870, 0.0
    %v879 = vmax.f32 %v871, 0.0
    %v880 = vmax.f32 %v872, 0.0
    %v881 = vpack.c.bf16 %v875, %v873
    %v882 = vpack.c.bf16 %v876, %v874
    %v883 = vpack.c.bf16 %v879, %v877
    %v884 = vpack.c.bf16 %v880, %v878
    %v885 = vld [vmem:[%s11] sm:$0xf]
    %v886 = vld [vmem:[%s11 + $0x4] sm:$0xf]
    %v887 = vld [vmem:[%s11 + $0x8] sm:$0xf]
    %v888 = vld [vmem:[%s11 + $0xc] sm:$0xf]
    %v889 = vld [vmem:[%s11 + $0x10] sm:$0xf]
    %v890 = vld [vmem:[%s11 + $0x14] sm:$0xf]
    %v891 = vld [vmem:[%s11 + $0x18] sm:$0xf]
    %v892 = vld [vmem:[%s11 + $0x1c] sm:$0xf]
    %v893 = vld [vmem:[%s11 + $0x20] sm:$0xf]
    %v894 = vld [vmem:[%s11 + $0x24] sm:$0xf]
    %v895 = vld [vmem:[%s11 + $0x28] sm:$0xf]
    %v896 = vld [vmem:[%s11 + $0x2c] sm:$0xf]
    %v897 = vld [vmem:[%s11 + $0x30] sm:$0xf]
    %v898 = vld [vmem:[%s11 + $0x34] sm:$0xf]
    %v899 = vld [vmem:[%s11 + $0x38] sm:$0xf]
    %v900 = vld [vmem:[%s11 + $0x3c] sm:$0xf]
    %v901 = vld [vmem:[%s11 + $0x40] sm:$0xf]
    %v902 = vld [vmem:[%s11 + $0x44] sm:$0xf]
    %v903 = vld [vmem:[%s11 + $0x48] sm:$0xf]
    %v904 = vld [vmem:[%s11 + $0x4c] sm:$0xf]
    %v905 = vld [vmem:[%s11 + $0x50] sm:$0xf]
    %v906 = vld [vmem:[%s11 + $0x54] sm:$0xf]
    %v907 = vld [vmem:[%s11 + $0x58] sm:$0xf]
    %v908 = vld [vmem:[%s11 + $0x5c] sm:$0xf]
    %v909 = vld [vmem:[%s11 + $0x60] sm:$0xf]
    %v910 = vld [vmem:[%s11 + $0x64] sm:$0xf]
    %v911 = vld [vmem:[%s11 + $0x68] sm:$0xf]
    %v912 = vld [vmem:[%s11 + $0x6c] sm:$0xf]
    %v913 = vld [vmem:[%s11 + $0x70] sm:$0xf]
    %v914 = vld [vmem:[%s11 + $0x74] sm:$0xf]
    %v915 = vld [vmem:[%s11 + $0x78] sm:$0xf]
    %v916 = vld [vmem:[%s11 + $0x7c] sm:$0xf]
    %v917 = vld [vmem:[%s12] sm:$0x1]
    %v919 = vlaneseq
    %v920 = vshrl.u32 %v919, 7
    %v921 = vsub.s32 0, %v920
    %v922 = vrot.slane %v917, %v921
    %v956 = vunpack.c.l.b16 %v885
    %v957 = vunpack.c.l.b16 %v886
    %v958 = vunpack.c.l.b16 %v887
    %v959 = vunpack.c.l.b16 %v888
    %v960 = vunpack.c.l.b16 %v889
    %v961 = vunpack.c.l.b16 %v890
    %v962 = vunpack.c.l.b16 %v891
    %v963 = vunpack.c.l.b16 %v892
    %v964 = vunpack.c.l.b16 %v893
    %v965 = vunpack.c.l.b16 %v894
    %v966 = vunpack.c.l.b16 %v895
    %v967 = vunpack.c.l.b16 %v896
    %v968 = vunpack.c.l.b16 %v897
    %v969 = vunpack.c.l.b16 %v898
    %v970 = vunpack.c.l.b16 %v899
    %v971 = vunpack.c.l.b16 %v900
    %v972 = vunpack.c.l.b16 %v901
    %v973 = vunpack.c.l.b16 %v902
    %v974 = vunpack.c.l.b16 %v903
    %v975 = vunpack.c.l.b16 %v904
    %v976 = vunpack.c.l.b16 %v905
    %v977 = vunpack.c.l.b16 %v906
    %v978 = vunpack.c.l.b16 %v907
    %v979 = vunpack.c.l.b16 %v908
    %v980 = vunpack.c.l.b16 %v909
    %v981 = vunpack.c.l.b16 %v910
    %v982 = vunpack.c.l.b16 %v911
    %v983 = vunpack.c.l.b16 %v912
    %v984 = vunpack.c.l.b16 %v913
    %v985 = vunpack.c.l.b16 %v914
    %v986 = vunpack.c.l.b16 %v915
    %v987 = vunpack.c.l.b16 %v916
    %v988 = vpack.c.b16 %v957, %v956
    %v989 = vpack.c.b16 %v959, %v958
    %v990 = vpack.c.b16 %v961, %v960
    %v991 = vpack.c.b16 %v963, %v962
    %v992 = vpack.c.b16 %v965, %v964
    %v993 = vpack.c.b16 %v967, %v966
    %v994 = vpack.c.b16 %v969, %v968
    %v995 = vpack.c.b16 %v971, %v970
    %v996 = vpack.c.b16 %v973, %v972
    %v997 = vpack.c.b16 %v975, %v974
    %v998 = vpack.c.b16 %v977, %v976
    %v999 = vpack.c.b16 %v979, %v978
    %v1000 = vpack.c.b16 %v981, %v980
    %v1001 = vpack.c.b16 %v983, %v982
    %v1002 = vpack.c.b16 %v985, %v984
    %v1003 = vpack.c.b16 %v987, %v986
    %1020 = vmatprep.subr.bf16.mxu0 0
    %1021 = vmatpush1.bf16.msra.mxu0 %v995
    %1022 = vmatprep.subr.bf16.mxu0 0
    %1023 = vmatpush1.bf16.msra.mxu0 %v994
    %1024 = vmatprep.subr.bf16.mxu0 0
    %1025 = vmatpush1.bf16.msra.mxu0 %v993
    %1026 = vmatprep.subr.bf16.mxu0 0
    %1027 = vmatpush1.bf16.msra.mxu0 %v992
    %1028 = vmatprep.subr.bf16.mxu0 0
    %1029 = vmatpush1.bf16.msra.mxu0 %v991
    %1030 = vmatprep.subr.bf16.mxu0 0
    %1031 = vmatpush1.bf16.msra.mxu0 %v990
    %1032 = vmatprep.subr.bf16.mxu0 0
    %1033 = vmatpush1.bf16.msra.mxu0 %v989
    %1034 = vmatprep.subr.bf16.mxu0 0
    %1035 = vmatpush1.bf16.msra.mxu0 %v988
    %1036 = vmatprep.subr.bf16.mxu0 0
    %1037 = vmatpush2.bf16.msra.mxu0 %v1003
    %1038 = vmatprep.subr.bf16.mxu0 0
    %1039 = vmatpush2.bf16.msra.mxu0 %v1002
    %1040 = vmatprep.subr.bf16.mxu0 0
    %1041 = vmatpush2.bf16.msra.mxu0 %v1001
    %1042 = vmatprep.subr.bf16.mxu0 0
    %1043 = vmatpush2.bf16.msra.mxu0 %v1000
    %1044 = vmatprep.subr.bf16.mxu0 0
    %1045 = vmatpush2.bf16.msra.mxu0 %v999
    %1046 = vmatprep.subr.bf16.mxu0 0
    %1047 = vmatpush2.bf16.msra.mxu0 %v998
    %1048 = vmatprep.subr.bf16.mxu0 0
    %1049 = vmatpush2.bf16.msra.mxu0 %v997
    %1050 = vmatprep.subr.bf16.mxu0 0
    %1051 = vmatpush2.bf16.msra.mxu0 %v996
    %1052 = vmatprep.mubr.bf16.mxu0 %v882
    %1053 = vmatmul.mubr.bf16.gmra.mxu0 %v881
    %v1054 = vpop.f32.mrf.mxu0
    %v1055 = vadd.f32 %v922, %v1054
    %v1056 = vpop.f32.mrf.mxu0
    %v1057 = vpop.f32.mrf.mxu0
    %v1058 = vadd.f32 %v922, %v1057
    %v1059 = vpop.f32.mrf.mxu0
    %1060 = vmatprep.mubr.bf16.mxu0 %v884
    %1061 = vmatmul.mubr.bf16.gmra.mxu0 %v883
    %v1062 = vpop.f32.mrf.mxu0
    %v1063 = vadd.f32 %v922, %v1062
    %v1064 = vpop.f32.mrf.mxu0
    %v1065 = vpop.f32.mrf.mxu0
    %v1066 = vadd.f32 %v922, %v1065
    %v1067 = vpop.f32.mrf.mxu0
    %1068 = vdwg.mxu0
    %v1069 = vmul.f32 %v1055, %v1055
    %v1070 = vmul.f32 %v1058, %v1058
    %v1071 = vmul.f32 %v1063, %v1063
    %v1072 = vmul.f32 %v1066, %v1066
    %1073 = vadd.xlane.f32.xlu0 %v1069
    %v1074 = vpop.xlane.xlu0 %1073
    %1075 = vadd.xlane.f32.xlu0 %v1070
    %v1076 = vpop.xlane.xlu0 %1075
    %1077 = vadd.xlane.f32.xlu0 %v1071
    %v1078 = vpop.xlane.xlu0 %1077
    %1079 = vadd.xlane.f32.xlu0 %v1072
    %v1080 = vpop.xlane.xlu0 %1079
    %v1081 = vmax.f32 %v1074, 1e-24
    %v1082 = vmax.f32 %v1076, 1e-24
    %v1083 = vmax.f32 %v1078, 1e-24
    %v1084 = vmax.f32 %v1080, 1e-24
    %v1085 = vrsqrt.pop %v1081
    %v1086 = vrsqrt.pop %v1082
    %v1087 = vrsqrt.pop %v1083
    %v1088 = vrsqrt.pop %v1084
    %v1089 = vmul.f32 %v1055, %v1085
    %v1090 = vmul.f32 %v1058, %v1086
    %v1091 = vmul.f32 %v1063, %v1087
    %v1092 = vmul.f32 %v1066, %v1088
    %v1093 = vld [vmem:[%s13] sm:$0xff]
    %v1094 = vld [vmem:[%s13 + $0x8] sm:$0xff]
    %v1095 = vld [vmem:[%s13 + $0x10] sm:$0xff]
    %v1096 = vld [vmem:[%s13 + $0x18] sm:$0xff]
    %v1097 = vld [vmem:[%s13 + $0x20] sm:$0xff]
    %v1098 = vld [vmem:[%s13 + $0x28] sm:$0xff]
    %v1099 = vld [vmem:[%s13 + $0x30] sm:$0xff]
    %v1100 = vld [vmem:[%s13 + $0x38] sm:$0xff]
    %v1101 = vld [vmem:[%s13 + $0x40] sm:$0xff]
    %v1102 = vld [vmem:[%s13 + $0x48] sm:$0xff]
    %v1103 = vld [vmem:[%s13 + $0x50] sm:$0xff]
    %v1104 = vld [vmem:[%s13 + $0x58] sm:$0xff]
    %v1105 = vld [vmem:[%s13 + $0x60] sm:$0xff]
    %v1106 = vld [vmem:[%s13 + $0x68] sm:$0xff]
    %v1107 = vld [vmem:[%s13 + $0x70] sm:$0xff]
    %v1108 = vld [vmem:[%s13 + $0x78] sm:$0xff]
    %v1109 = vld [vmem:[%s14] sm:$0x3]
    %v1111 = vlaneseq
    %v1112 = vshrl.u32 %v1111, 7
    %v1113 = vsub.s32 0, %v1112
    %v1114 = vrot.slane %v1109, %v1113
    %v1115 = vlaneseq
    %v1116 = vshrl.u32 %v1115, 7
    %v1117 = vsub.s32 1, %v1116
    %v1118 = vrot.slane %v1109, %v1117
    %v1121 = vunpack.c.h.b16 %v64
    %v1122 = vunpack.c.h.b16 %v65
    %v1123 = vunpack.c.h.b16 %v66
    %v1124 = vunpack.c.h.b16 %v67
    %v1125 = vpack.c.b16 %v1122, %v1121
    %v1126 = vpack.c.b16 %v1124, %v1123
    %v1145 = vunpack.c.l.b16 %v1093
    %v1146 = vunpack.c.h.b16 %v1093
    %v1147 = vunpack.c.l.b16 %v1094
    %v1148 = vunpack.c.h.b16 %v1094
    %v1149 = vunpack.c.l.b16 %v1095
    %v1150 = vunpack.c.h.b16 %v1095
    %v1151 = vunpack.c.l.b16 %v1096
    %v1152 = vunpack.c.h.b16 %v1096
    %v1153 = vunpack.c.l.b16 %v1097
    %v1154 = vunpack.c.h.b16 %v1097
    %v1155 = vunpack.c.l.b16 %v1098
    %v1156 = vunpack.c.h.b16 %v1098
    %v1157 = vunpack.c.l.b16 %v1099
    %v1158 = vunpack.c.h.b16 %v1099
    %v1159 = vunpack.c.l.b16 %v1100
    %v1160 = vunpack.c.h.b16 %v1100
    %v1161 = vunpack.c.l.b16 %v1101
    %v1162 = vunpack.c.h.b16 %v1101
    %v1163 = vunpack.c.l.b16 %v1102
    %v1164 = vunpack.c.h.b16 %v1102
    %v1165 = vunpack.c.l.b16 %v1103
    %v1166 = vunpack.c.h.b16 %v1103
    %v1167 = vunpack.c.l.b16 %v1104
    %v1168 = vunpack.c.h.b16 %v1104
    %v1169 = vunpack.c.l.b16 %v1105
    %v1170 = vunpack.c.h.b16 %v1105
    %v1171 = vunpack.c.l.b16 %v1106
    %v1172 = vunpack.c.h.b16 %v1106
    %v1173 = vunpack.c.l.b16 %v1107
    %v1174 = vunpack.c.h.b16 %v1107
    %v1175 = vunpack.c.l.b16 %v1108
    %v1176 = vunpack.c.h.b16 %v1108
    %v1177 = vpack.c.b16 %v1147, %v1145
    %v1178 = vpack.c.b16 %v1148, %v1146
    %v1179 = vpack.c.b16 %v1151, %v1149
    %v1180 = vpack.c.b16 %v1152, %v1150
    %v1181 = vpack.c.b16 %v1155, %v1153
    %v1182 = vpack.c.b16 %v1156, %v1154
    %v1183 = vpack.c.b16 %v1159, %v1157
    %v1184 = vpack.c.b16 %v1160, %v1158
    %v1185 = vpack.c.b16 %v1163, %v1161
    %v1186 = vpack.c.b16 %v1164, %v1162
    %v1187 = vpack.c.b16 %v1167, %v1165
    %v1188 = vpack.c.b16 %v1168, %v1166
    %v1189 = vpack.c.b16 %v1171, %v1169
    %v1190 = vpack.c.b16 %v1172, %v1170
    %v1191 = vpack.c.b16 %v1175, %v1173
    %v1192 = vpack.c.b16 %v1176, %v1174
    %1209 = vmatprep.subr.bf16.mxu0 %v1192
    %1210 = vmatpush1.bf16.msra.mxu0 %v1191
    %1211 = vmatprep.subr.bf16.mxu0 %v1190
    %1212 = vmatpush1.bf16.msra.mxu0 %v1189
    %1213 = vmatprep.subr.bf16.mxu0 %v1188
    %1214 = vmatpush1.bf16.msra.mxu0 %v1187
    %1215 = vmatprep.subr.bf16.mxu0 %v1186
    %1216 = vmatpush1.bf16.msra.mxu0 %v1185
    %1217 = vmatprep.subr.bf16.mxu0 %v1184
    %1218 = vmatpush1.bf16.msra.mxu0 %v1183
    %1219 = vmatprep.subr.bf16.mxu0 %v1182
    %1220 = vmatpush1.bf16.msra.mxu0 %v1181
    %1221 = vmatprep.subr.bf16.mxu0 %v1180
    %1222 = vmatpush1.bf16.msra.mxu0 %v1179
    %1223 = vmatprep.subr.bf16.mxu0 %v1178
    %1224 = vmatpush1.bf16.msra.mxu0 %v1177
    %1225 = vmatprep.subr.bf16.mxu0 0
    %1226 = vmatpush2.bf16.msra.mxu0 0
    %1227 = vmatprep.subr.bf16.mxu0 0
    %1228 = vmatpush2.bf16.msra.mxu0 0
    %1229 = vmatprep.subr.bf16.mxu0 0
    %1230 = vmatpush2.bf16.msra.mxu0 0
    %1231 = vmatprep.subr.bf16.mxu0 0
    %1232 = vmatpush2.bf16.msra.mxu0 0
    %1233 = vmatprep.subr.bf16.mxu0 0
    %1234 = vmatpush2.bf16.msra.mxu0 0
    %1235 = vmatprep.subr.bf16.mxu0 0
    %1236 = vmatpush2.bf16.msra.mxu0 0
    %1237 = vmatprep.subr.bf16.mxu0 0
    %1238 = vmatpush2.bf16.msra.mxu0 0
    %1239 = vmatprep.subr.bf16.mxu0 0
    %1240 = vmatpush2.bf16.msra.mxu0 0
    %1241 = vmatprep.mubr.bf16.mxu0 0
    %1242 = vmatmul.mubr.bf16.gmra.mxu0 %v1125
    %v1243 = vpop.f32.mrf.mxu0
    %v1244 = vadd.f32 %v1114, %v1243
    %v1245 = vpop.f32.mrf.mxu0
    %v1246 = vadd.f32 %v1118, %v1245
    %v1247 = vpop.f32.mrf.mxu0
    %v1248 = vadd.f32 %v1114, %v1247
    %v1249 = vpop.f32.mrf.mxu0
    %v1250 = vadd.f32 %v1118, %v1249
    %1251 = vmatprep.mubr.bf16.mxu0 0
    %1252 = vmatmul.mubr.bf16.gmra.mxu0 %v1126
    %v1253 = vpop.f32.mrf.mxu0
    %v1254 = vadd.f32 %v1114, %v1253
    %v1255 = vpop.f32.mrf.mxu0
    %v1256 = vadd.f32 %v1118, %v1255
    %v1257 = vpop.f32.mrf.mxu0
    %v1258 = vadd.f32 %v1114, %v1257
    %v1259 = vpop.f32.mrf.mxu0
    %v1260 = vadd.f32 %v1118, %v1259
    %1261 = vdwg.mxu0
    %v1262 = vadd.f32 %v1244, %v1248
    %v1263 = vrot.slane %v1262, 4
    %v1264 = vadd.f32 %v1262, %v1263
    %v1265 = vrot.slane %v1264, 2
    %v1266 = vadd.f32 %v1264, %v1265
    %v1267 = vrot.slane %v1266, 1
    %v1268 = vadd.f32 %v1266, %v1267
    %v1269 = vadd.f32 %v1246, %v1250
    %v1270 = vrot.slane %v1269, 4
    %v1271 = vadd.f32 %v1269, %v1270
    %v1272 = vrot.slane %v1271, 2
    %v1273 = vadd.f32 %v1271, %v1272
    %v1274 = vrot.slane %v1273, 1
    %v1275 = vadd.f32 %v1273, %v1274
    %v1276 = vadd.f32 %v1254, %v1258
    %v1277 = vrot.slane %v1276, 4
    %v1278 = vadd.f32 %v1276, %v1277
    %v1279 = vrot.slane %v1278, 2
    %v1280 = vadd.f32 %v1278, %v1279
    %v1281 = vrot.slane %v1280, 1
    %v1282 = vadd.f32 %v1280, %v1281
    %v1283 = vadd.f32 %v1256, %v1260
    %v1284 = vrot.slane %v1283, 4
    %v1285 = vadd.f32 %v1283, %v1284
    %v1286 = vrot.slane %v1285, 2
    %v1287 = vadd.f32 %v1285, %v1286
    %v1288 = vrot.slane %v1287, 1
    %v1289 = vadd.f32 %v1287, %v1288
    %v1290 = vmul.f32 %v1268, %v269
    %v1291 = vmul.f32 %v1275, %v269
    %v1292 = vmul.f32 %v1282, %v269
    %v1293 = vmul.f32 %v1289, %v269
    %v1294 = vsub.f32 %v1244, %v1290
    %v1295 = vsub.f32 %v1246, %v1291
    %v1296 = vsub.f32 %v1248, %v1290
    %v1297 = vsub.f32 %v1250, %v1291
    %v1298 = vsub.f32 %v1254, %v1292
    %v1299 = vsub.f32 %v1256, %v1293
    %v1300 = vsub.f32 %v1258, %v1292
    %v1301 = vsub.f32 %v1260, %v1293
    %v1302 = vmul.f32 %v1294, %v1294
    %v1303 = vmul.f32 %v1295, %v1295
    %v1304 = vmul.f32 %v1296, %v1296
    %v1305 = vmul.f32 %v1297, %v1297
    %v1306 = vmul.f32 %v1298, %v1298
    %v1307 = vmul.f32 %v1299, %v1299
    %v1308 = vmul.f32 %v1300, %v1300
    %v1309 = vmul.f32 %v1301, %v1301
    %v1310 = vadd.f32 %v1302, %v1304
    %v1311 = vrot.slane %v1310, 4
    %v1312 = vadd.f32 %v1310, %v1311
    %v1313 = vrot.slane %v1312, 2
    %v1314 = vadd.f32 %v1312, %v1313
    %v1315 = vrot.slane %v1314, 1
    %v1316 = vadd.f32 %v1314, %v1315
    %v1317 = vadd.f32 %v1303, %v1305
    %v1318 = vrot.slane %v1317, 4
    %v1319 = vadd.f32 %v1317, %v1318
    %v1320 = vrot.slane %v1319, 2
    %v1321 = vadd.f32 %v1319, %v1320
    %v1322 = vrot.slane %v1321, 1
    %v1323 = vadd.f32 %v1321, %v1322
    %v1324 = vadd.f32 %v1306, %v1308
    %v1325 = vrot.slane %v1324, 4
    %v1326 = vadd.f32 %v1324, %v1325
    %v1327 = vrot.slane %v1326, 2
    %v1328 = vadd.f32 %v1326, %v1327
    %v1329 = vrot.slane %v1328, 1
    %v1330 = vadd.f32 %v1328, %v1329
    %v1331 = vadd.f32 %v1307, %v1309
    %v1332 = vrot.slane %v1331, 4
    %v1333 = vadd.f32 %v1331, %v1332
    %v1334 = vrot.slane %v1333, 2
    %v1335 = vadd.f32 %v1333, %v1334
    %v1336 = vrot.slane %v1335, 1
    %v1337 = vadd.f32 %v1335, %v1336
    %v1338 = vmul.f32 %v1316, %v269
    %v1339 = vmul.f32 %v1323, %v269
    %v1340 = vmul.f32 %v1330, %v269
    %v1341 = vmul.f32 %v1337, %v269
    %v1342 = vadd.f32 %v1338, 1e-05
    %v1343 = vadd.f32 %v1339, 1e-05
    %v1344 = vadd.f32 %v1340, 1e-05
    %v1345 = vadd.f32 %v1341, 1e-05
    %v1346 = vrsqrt.pop %v1342
    %v1347 = vrsqrt.pop %v1343
    %v1348 = vrsqrt.pop %v1344
    %v1349 = vrsqrt.pop %v1345
    %v1350 = vmul.f32 %v1294, %v1346
    %v1351 = vmul.f32 %v1295, %v1347
    %v1352 = vmul.f32 %v1296, %v1346
    %v1353 = vmul.f32 %v1297, %v1347
    %v1354 = vmul.f32 %v1298, %v1348
    %v1355 = vmul.f32 %v1299, %v1349
    %v1356 = vmul.f32 %v1300, %v1348
    %v1357 = vmul.f32 %v1301, %v1349
    %v1358 = vld [vmem:[%s15] sm:$0x3]
    %v1360 = vlaneseq
    %v1361 = vshrl.u32 %v1360, 7
    %v1362 = vsub.s32 0, %v1361
    %v1363 = vrot.slane %v1358, %v1362
    %v1364 = vlaneseq
    %v1365 = vshrl.u32 %v1364, 7
    %v1366 = vsub.s32 1, %v1365
    %v1367 = vrot.slane %v1358, %v1366
    %v1370 = vmul.f32 %v1350, %v1363
    %v1371 = vmul.f32 %v1351, %v1367
    %v1372 = vmul.f32 %v1352, %v1363
    %v1373 = vmul.f32 %v1353, %v1367
    %v1374 = vmul.f32 %v1354, %v1363
    %v1375 = vmul.f32 %v1355, %v1367
    %v1376 = vmul.f32 %v1356, %v1363
    %v1377 = vmul.f32 %v1357, %v1367
    %v1378 = vld [vmem:[%s16] sm:$0x3]
    %v1380 = vlaneseq
    %v1381 = vshrl.u32 %v1380, 7
    %v1382 = vsub.s32 0, %v1381
    %v1383 = vrot.slane %v1378, %v1382
    %v1384 = vlaneseq
    %v1385 = vshrl.u32 %v1384, 7
    %v1386 = vsub.s32 1, %v1385
    %v1387 = vrot.slane %v1378, %v1386
    %v1390 = vadd.f32 %v1370, %v1383
    %v1391 = vadd.f32 %v1371, %v1387
    %v1392 = vadd.f32 %v1372, %v1383
    %v1393 = vadd.f32 %v1373, %v1387
    %v1394 = vadd.f32 %v1374, %v1383
    %v1395 = vadd.f32 %v1375, %v1387
    %v1396 = vadd.f32 %v1376, %v1383
    %v1397 = vadd.f32 %v1377, %v1387
    %v1398 = vmax.f32 %v1390, 0.0
    %v1399 = vmax.f32 %v1391, 0.0
    %v1400 = vmax.f32 %v1392, 0.0
    %v1401 = vmax.f32 %v1393, 0.0
    %v1402 = vmax.f32 %v1394, 0.0
    %v1403 = vmax.f32 %v1395, 0.0
    %v1404 = vmax.f32 %v1396, 0.0
    %v1405 = vmax.f32 %v1397, 0.0
    %v1406 = vpack.c.bf16 %v1400, %v1398
    %v1407 = vpack.c.bf16 %v1401, %v1399
    %v1408 = vpack.c.bf16 %v1404, %v1402
    %v1409 = vpack.c.bf16 %v1405, %v1403
    %v1410 = vld [vmem:[%s17] sm:$0xf]
    %v1411 = vld [vmem:[%s17 + $0x4] sm:$0xf]
    %v1412 = vld [vmem:[%s17 + $0x8] sm:$0xf]
    %v1413 = vld [vmem:[%s17 + $0xc] sm:$0xf]
    %v1414 = vld [vmem:[%s17 + $0x10] sm:$0xf]
    %v1415 = vld [vmem:[%s17 + $0x14] sm:$0xf]
    %v1416 = vld [vmem:[%s17 + $0x18] sm:$0xf]
    %v1417 = vld [vmem:[%s17 + $0x1c] sm:$0xf]
    %v1418 = vld [vmem:[%s17 + $0x20] sm:$0xf]
    %v1419 = vld [vmem:[%s17 + $0x24] sm:$0xf]
    %v1420 = vld [vmem:[%s17 + $0x28] sm:$0xf]
    %v1421 = vld [vmem:[%s17 + $0x2c] sm:$0xf]
    %v1422 = vld [vmem:[%s17 + $0x30] sm:$0xf]
    %v1423 = vld [vmem:[%s17 + $0x34] sm:$0xf]
    %v1424 = vld [vmem:[%s17 + $0x38] sm:$0xf]
    %v1425 = vld [vmem:[%s17 + $0x3c] sm:$0xf]
    %v1426 = vld [vmem:[%s17 + $0x40] sm:$0xf]
    %v1427 = vld [vmem:[%s17 + $0x44] sm:$0xf]
    %v1428 = vld [vmem:[%s17 + $0x48] sm:$0xf]
    %v1429 = vld [vmem:[%s17 + $0x4c] sm:$0xf]
    %v1430 = vld [vmem:[%s17 + $0x50] sm:$0xf]
    %v1431 = vld [vmem:[%s17 + $0x54] sm:$0xf]
    %v1432 = vld [vmem:[%s17 + $0x58] sm:$0xf]
    %v1433 = vld [vmem:[%s17 + $0x5c] sm:$0xf]
    %v1434 = vld [vmem:[%s17 + $0x60] sm:$0xf]
    %v1435 = vld [vmem:[%s17 + $0x64] sm:$0xf]
    %v1436 = vld [vmem:[%s17 + $0x68] sm:$0xf]
    %v1437 = vld [vmem:[%s17 + $0x6c] sm:$0xf]
    %v1438 = vld [vmem:[%s17 + $0x70] sm:$0xf]
    %v1439 = vld [vmem:[%s17 + $0x74] sm:$0xf]
    %v1440 = vld [vmem:[%s17 + $0x78] sm:$0xf]
    %v1441 = vld [vmem:[%s17 + $0x7c] sm:$0xf]
    %v1442 = vld [vmem:[%s18] sm:$0x1]
    %v1444 = vlaneseq
    %v1445 = vshrl.u32 %v1444, 7
    %v1446 = vsub.s32 0, %v1445
    %v1447 = vrot.slane %v1442, %v1446
    %v1481 = vunpack.c.l.b16 %v1410
    %v1482 = vunpack.c.l.b16 %v1411
    %v1483 = vunpack.c.l.b16 %v1412
    %v1484 = vunpack.c.l.b16 %v1413
    %v1485 = vunpack.c.l.b16 %v1414
    %v1486 = vunpack.c.l.b16 %v1415
    %v1487 = vunpack.c.l.b16 %v1416
    %v1488 = vunpack.c.l.b16 %v1417
    %v1489 = vunpack.c.l.b16 %v1418
    %v1490 = vunpack.c.l.b16 %v1419
    %v1491 = vunpack.c.l.b16 %v1420
    %v1492 = vunpack.c.l.b16 %v1421
    %v1493 = vunpack.c.l.b16 %v1422
    %v1494 = vunpack.c.l.b16 %v1423
    %v1495 = vunpack.c.l.b16 %v1424
    %v1496 = vunpack.c.l.b16 %v1425
    %v1497 = vunpack.c.l.b16 %v1426
    %v1498 = vunpack.c.l.b16 %v1427
    %v1499 = vunpack.c.l.b16 %v1428
    %v1500 = vunpack.c.l.b16 %v1429
    %v1501 = vunpack.c.l.b16 %v1430
    %v1502 = vunpack.c.l.b16 %v1431
    %v1503 = vunpack.c.l.b16 %v1432
    %v1504 = vunpack.c.l.b16 %v1433
    %v1505 = vunpack.c.l.b16 %v1434
    %v1506 = vunpack.c.l.b16 %v1435
    %v1507 = vunpack.c.l.b16 %v1436
    %v1508 = vunpack.c.l.b16 %v1437
    %v1509 = vunpack.c.l.b16 %v1438
    %v1510 = vunpack.c.l.b16 %v1439
    %v1511 = vunpack.c.l.b16 %v1440
    %v1512 = vunpack.c.l.b16 %v1441
    %v1513 = vpack.c.b16 %v1482, %v1481
    %v1514 = vpack.c.b16 %v1484, %v1483
    %v1515 = vpack.c.b16 %v1486, %v1485
    %v1516 = vpack.c.b16 %v1488, %v1487
    %v1517 = vpack.c.b16 %v1490, %v1489
    %v1518 = vpack.c.b16 %v1492, %v1491
    %v1519 = vpack.c.b16 %v1494, %v1493
    %v1520 = vpack.c.b16 %v1496, %v1495
    %v1521 = vpack.c.b16 %v1498, %v1497
    %v1522 = vpack.c.b16 %v1500, %v1499
    %v1523 = vpack.c.b16 %v1502, %v1501
    %v1524 = vpack.c.b16 %v1504, %v1503
    %v1525 = vpack.c.b16 %v1506, %v1505
    %v1526 = vpack.c.b16 %v1508, %v1507
    %v1527 = vpack.c.b16 %v1510, %v1509
    %v1528 = vpack.c.b16 %v1512, %v1511
    %1545 = vmatprep.subr.bf16.mxu0 0
    %1546 = vmatpush1.bf16.msra.mxu0 %v1520
    %1547 = vmatprep.subr.bf16.mxu0 0
    %1548 = vmatpush1.bf16.msra.mxu0 %v1519
    %1549 = vmatprep.subr.bf16.mxu0 0
    %1550 = vmatpush1.bf16.msra.mxu0 %v1518
    %1551 = vmatprep.subr.bf16.mxu0 0
    %1552 = vmatpush1.bf16.msra.mxu0 %v1517
    %1553 = vmatprep.subr.bf16.mxu0 0
    %1554 = vmatpush1.bf16.msra.mxu0 %v1516
    %1555 = vmatprep.subr.bf16.mxu0 0
    %1556 = vmatpush1.bf16.msra.mxu0 %v1515
    %1557 = vmatprep.subr.bf16.mxu0 0
    %1558 = vmatpush1.bf16.msra.mxu0 %v1514
    %1559 = vmatprep.subr.bf16.mxu0 0
    %1560 = vmatpush1.bf16.msra.mxu0 %v1513
    %1561 = vmatprep.subr.bf16.mxu0 0
    %1562 = vmatpush2.bf16.msra.mxu0 %v1528
    %1563 = vmatprep.subr.bf16.mxu0 0
    %1564 = vmatpush2.bf16.msra.mxu0 %v1527
    %1565 = vmatprep.subr.bf16.mxu0 0
    %1566 = vmatpush2.bf16.msra.mxu0 %v1526
    %1567 = vmatprep.subr.bf16.mxu0 0
    %1568 = vmatpush2.bf16.msra.mxu0 %v1525
    %1569 = vmatprep.subr.bf16.mxu0 0
    %1570 = vmatpush2.bf16.msra.mxu0 %v1524
    %1571 = vmatprep.subr.bf16.mxu0 0
    %1572 = vmatpush2.bf16.msra.mxu0 %v1523
    %1573 = vmatprep.subr.bf16.mxu0 0
    %1574 = vmatpush2.bf16.msra.mxu0 %v1522
    %1575 = vmatprep.subr.bf16.mxu0 0
    %1576 = vmatpush2.bf16.msra.mxu0 %v1521
    %1577 = vmatprep.mubr.bf16.mxu0 %v1407
    %1578 = vmatmul.mubr.bf16.gmra.mxu0 %v1406
    %v1579 = vpop.f32.mrf.mxu0
    %v1580 = vadd.f32 %v1447, %v1579
    %v1581 = vpop.f32.mrf.mxu0
    %v1582 = vpop.f32.mrf.mxu0
    %v1583 = vadd.f32 %v1447, %v1582
    %v1584 = vpop.f32.mrf.mxu0
    %1585 = vmatprep.mubr.bf16.mxu0 %v1409
    %1586 = vmatmul.mubr.bf16.gmra.mxu0 %v1408
    %v1587 = vpop.f32.mrf.mxu0
    %v1588 = vadd.f32 %v1447, %v1587
    %v1589 = vpop.f32.mrf.mxu0
    %v1590 = vpop.f32.mrf.mxu0
    %v1591 = vadd.f32 %v1447, %v1590
    %v1592 = vpop.f32.mrf.mxu0
    %1593 = vdwg.mxu0
    %v1594 = vmul.f32 %v1580, %v1580
    %v1595 = vmul.f32 %v1583, %v1583
    %v1596 = vmul.f32 %v1588, %v1588
    %v1597 = vmul.f32 %v1591, %v1591
    %1598 = vadd.xlane.f32.xlu0 %v1594
    %v1599 = vpop.xlane.xlu0 %1598
    %1600 = vadd.xlane.f32.xlu0 %v1595
    %v1601 = vpop.xlane.xlu0 %1600
    %1602 = vadd.xlane.f32.xlu0 %v1596
    %v1603 = vpop.xlane.xlu0 %1602
    %1604 = vadd.xlane.f32.xlu0 %v1597
    %v1605 = vpop.xlane.xlu0 %1604
    %v1606 = vmax.f32 %v1599, 1e-24
    %v1607 = vmax.f32 %v1601, 1e-24
    %v1608 = vmax.f32 %v1603, 1e-24
    %v1609 = vmax.f32 %v1605, 1e-24
    %v1610 = vrsqrt.pop %v1606
    %v1611 = vrsqrt.pop %v1607
    %v1612 = vrsqrt.pop %v1608
    %v1613 = vrsqrt.pop %v1609
    %v1614 = vmul.f32 %v1580, %v1610
    %v1615 = vmul.f32 %v1583, %v1611
    %v1616 = vmul.f32 %v1588, %v1612
    %v1617 = vmul.f32 %v1591, %v1613
    %v1618 = vmul.f32 %v1089, %v1616
    %v1619 = vmul.f32 %v1090, %v1617
    %v1620 = vmul.f32 %v1091, %v1614
    %v1621 = vmul.f32 %v1092, %v1615
    %1622 = vadd.xlane.f32.xlu0 %v1618
    %v1623 = vpop.xlane.xlu0 %1622
    %1624 = vadd.xlane.f32.xlu0 %v1619
    %v1625 = vpop.xlane.xlu0 %1624
    %1626 = vadd.xlane.f32.xlu0 %v1620
    %v1627 = vpop.xlane.xlu0 %1626
    %1628 = vadd.xlane.f32.xlu0 %v1621
    %v1629 = vpop.xlane.xlu0 %1628
    %v1630 = vadd.f32 %v1623, %v1625
    %v1631 = vadd.f32 %v1630, %v1627
    %v1632 = vadd.f32 %v1631, %v1629
    %v1633 = vrot.slane %v1632, 4
    %v1634 = vadd.f32 %v1632, %v1633
    %v1635 = vrot.slane %v1634, 2
    %v1636 = vadd.f32 %v1634, %v1635
    %v1637 = vrot.slane %v1636, 1
    %v1638 = vadd.f32 %v1636, %v1637
    %v1639 = vmul.f32 %v1638, 0.125
    %v1640 = vsub.f32 4.0, %v1639
    %vm1641 = vcmask 0
    %1642 = vst.msk [vmem:[#allocation2] sm:$0x1] %vm1641, %v1640
    // Predicated region
    $region78: #{byol_forward.3} parent=1 // pred_check
      _
    $region79: #{byol_forward.3} parent=1 // pred_check_branch
      %1644 = sbr.rel (0) target = $region81
    $region80: #{byol_forward.3} parent=1 // pred_region
      %s1646 = ssub.s32 16, 16
      %1647 = vsyncadd [#allocation3], %s1646
      %s1649 = sshll.u32 [#allocation2], 4
      %s1650 = int_to_ptr.vmem [resolvable:$true] %s1649
      %1652 = dma.vmem_to_hbm [thread:$0]  %s1650, 16, %s19, [#allocation3]
    $region81: #{byol_forward.3} parent=1 // pred_fallthru
      _
    // Predicated region
    $region82: #{byol_forward.3} parent=1 // pred_check
      _
    $region83: #{byol_forward.3} parent=1 // pred_check_branch
      %1654 = sbr.rel (0) target = $region85
    $region84: #{byol_forward.3} parent=1 // pred_region
      %1655 = dma.done [#allocation3], 16
    $region85: #{byol_forward.3} parent=1 // pred_fallthru
      _
    %1656 = vsyncpa [#allocation3], 1

</llo_original>
